<compile_context>
chip_gen: v7x
topology: tpu7x:2x2x1
jax: 0.10.0
libtpu: 0.0.40
codegen_flags: <defaults>
</compile_context>

<pallas_src>
import math

import jax
import jax.numpy as jnp
from jax.experimental import pallas as pl
from jax.experimental.pallas import tpu as pltpu

VAR0, VAR1 = 0.1, 0.2                                # SSD encode/decode variances
BL1_ALPHA, BL1_GAMMA, BL1_BETA = 0.5, 1.5, 0.11      # BalancedL1
_BL1_B = math.exp(BL1_GAMMA / BL1_ALPHA) - 1.0       # constant-folded in Python
TOPK = 15
EPS = 1e-7

_LANE = 128
_QUAL_PT = 1024      # priors per lane-tile in the quality kernel
_LOC_ROWS = 8        # sublane rows (x128 lanes) per step of the loc-loss kernel
_GF_ROWS = 2048      # (rows,128) rows per step of the GFocal background kernel
_VMEM_LIMIT = 32 * 1024 * 1024


# ----------------------------------------------------------------------------
# helpers
# ----------------------------------------------------------------------------
def _round_up(x, m):
    return ((x + m - 1) // m) * m


def _pad_axis(x, axis, target, value=0.0):
    pad = target - x.shape[axis]
    if pad <= 0:
        return x
    widths = [(0, 0)] * x.ndim
    widths[axis] = (0, pad)
    return jnp.pad(x, widths, constant_values=value)


# ----------------------------------------------------------------------------
# Pallas kernels
# ----------------------------------------------------------------------------
def _quality_kernel(truths_ref, loc_ref, prior_ref, gcls_ref, reg_q_ref, cls_q_ref):
    # truths_ref: (1,G,4) xyxy f32; loc_ref: (1,4,PT) f32; prior_ref: (4,PT) cxcywh f32;
    # gcls_ref: (1,G,PT) bf16 own-label logits; outputs: (1,G,PT) bf16 column-max
    # suppressed quality matrices.
    t = truths_ref[0]                                  # (G, 4)
    pr = prior_ref[...]                                # (4, PT)
    G = t.shape[0]
    PT = pr.shape[1]

    # hoisted truth-box lane broadcasts (reused by both IoU computations)
    tx1 = jnp.broadcast_to(t[:, 0:1], (G, PT))
    ty1 = jnp.broadcast_to(t[:, 1:2], (G, PT))
    tx2 = jnp.broadcast_to(t[:, 2:3], (G, PT))
    ty2 = jnp.broadcast_to(t[:, 3:4], (G, PT))
    area_t = jnp.broadcast_to((t[:, 2:3] - t[:, 0:1]) * (t[:, 3:4] - t[:, 1:2]),
                              (G, PT))

    pcx, pcy, pw, ph = pr[0:1], pr[1:2], pr[2:3], pr[3:4]
    lp = loc_ref[0]                                    # (4, PT)

    def iou(bx1, by1, bx2, by2, area_b):
        iw = jnp.maximum(jnp.minimum(tx2, bx2) - jnp.maximum(tx1, bx1), 0.0)
        ih = jnp.maximum(jnp.minimum(ty2, by2) - jnp.maximum(ty1, by1), 0.0)
        inter = iw * ih
        union = area_t + area_b - inter + EPS
        return inter * pl.reciprocal(union, approx=True)

    def suppress(q):
        # column-max suppression (fused _assign step): keep per-prior max over G
        return jnp.where(q == q.max(axis=0, keepdims=True), q, 0.0)

    # ---- decode(loc_p, priors) fused in-kernel ----
    dcx = pcx + lp[0:1] * VAR0 * pw
    dcy = pcy + lp[1:2] * VAR0 * ph
    dw = pw * jnp.exp(lp[2:3] * VAR1)
    dh = ph * jnp.exp(lp[3:4] * VAR1)
    dx1 = dcx - 0.5 * dw
    dy1 = dcy - 0.5 * dh
    reg_q = iou(dx1, dy1, dx1 + dw, dy1 + dh, dw * dh)
    reg_q_ref[0] = suppress(reg_q).astype(reg_q_ref.dtype)

    # ---- anchor IoU (point_form fused) * sigmoid(own-label logit), sqrt ----
    ax1 = pcx - 0.5 * pw
    ay1 = pcy - 0.5 * ph
    acr = iou(ax1, ay1, ax1 + pw, ay1 + ph, pw * ph)
    g = gcls_ref[0].astype(jnp.float32)                # bf16 -> f32 after load
    e = jnp.exp(-jnp.abs(g))
    inv1pe = pl.reciprocal(1.0 + e, approx=True)
    sig = jnp.where(g >= 0.0, inv1pe, e * inv1pe)      # sigmoid with one exp
    cls_q = jnp.sqrt(jnp.maximum(acr * sig, 0.0))
    cls_q_ref[0] = suppress(cls_q).astype(cls_q_ref.dtype)


def _gfocal_kernel(x_ref, out_ref, acc_ref):
    # x_ref: (ROWS,128) bf16 lane-dense flattened logits.
    # Sums BCE(x,0)*sigmoid(x)^2 ("background" GFocal term) over the block.
    @pl.when(pl.program_id(1) == 0)
    def _():
        acc_ref[0] = 0.0

    x = x_ref[...].astype(jnp.float32)                 # upcast immediately (v5e!)
    e = jnp.exp(-jnp.abs(x))                           # single exp reused below
    inv1pe = pl.reciprocal(1.0 + e, approx=True)
    p = jnp.where(x >= 0.0, inv1pe, e * inv1pe)        # sigmoid(x)
    bce0 = jnp.maximum(x, 0.0) + jnp.log(1.0 + e)      # stable BCE(x, target=0)
    acc_ref[0] += jnp.sum(bce0 * p * p)

    @pl.when(pl.program_id(1) == pl.num_programs(1) - 1)
    def _():
        sub = jax.lax.broadcasted_iota(jnp.int32, (1, 8, _LANE), 1)
        lane = jax.lax.broadcasted_iota(jnp.int32, (1, 8, _LANE), 2)
        out_ref[...] = jnp.where((sub == 0) & (lane == 0), acc_ref[0], 0.0)


def _loc_loss_kernel(flags_ref, lp_ref, lt_ref, pr_ref, w_ref, out_ref, acc_ref):
    # flags_ref: (N, n_j) int32 in SMEM (scalar prefetch); lp/lt: (1,4,8,128);
    # pr: (4,8,128); w: (1,1,8,128); out: (1,8,128) per-image partial sum.
    n = pl.program_id(0)
    j = pl.program_id(1)

    @pl.when(j == 0)
    def _():
        acc_ref[0] = 0.0

    @pl.when(flags_ref[n, j] != 0)     # skip tiles with no positive weight
    def _():
        lp = lp_ref[0]                       # (4, 8, 128)
        lt = lt_ref[0]
        pr = pr_ref[...]
        w = w_ref[0, 0]                      # (8, 128) per-coordinate weight

        pcx, pcy = pr[0], pr[1]
        pw = jnp.maximum(pr[2], EPS)
        ph = jnp.maximum(pr[3], EPS)
        tx1, ty1, tx2, ty2 = lt[0], lt[1], lt[2], lt[3]
        lpx, lpy, lpw, lph = lp[0], lp[1], lp[2], lp[3]

        tw = jnp.maximum(tx2 - tx1, EPS)     # degenerate/padded GT stays finite
        th = jnp.maximum(ty2 - ty1, EPS)

        # ---- encode(loc_t, priors) ----
        gcx = ((tx1 + tx2) * 0.5 - pcx) / (VAR0 * pw)
        gcy = ((ty1 + ty2) * 0.5 - pcy) / (VAR0 * ph)
        gw = jnp.log(tw / pw) / VAR1
        gh = jnp.log(th / ph) / VAR1

        # ---- BalancedL1Loss(loc_p, encoded, weights) ----
        def bl1(d):
            small = (BL1_ALPHA / _BL1_B * (_BL1_B * d + 1.0)
                     * jnp.log(_BL1_B * d / BL1_BETA + 1.0) - BL1_ALPHA * d)
            large = BL1_GAMMA * d + BL1_GAMMA / _BL1_B - BL1_ALPHA * BL1_BETA
            return jnp.where(d < BL1_BETA, small, large)

        loss_l1 = jnp.sum((bl1(jnp.abs(lpx - gcx)) + bl1(jnp.abs(lpy - gcy))
                           + bl1(jnp.abs(lpw - gw)) + bl1(jnp.abs(lph - gh))) * w)

        # ---- decode(loc_p, priors) -> xyxy ----
        dcx = pcx + lpx * VAR0 * pw
        dcy = pcy + lpy * VAR0 * ph
        dw = pw * jnp.exp(lpw * VAR1)
        dh = ph * jnp.exp(lph * VAR1)
        px1 = dcx - dw * 0.5
        py1 = dcy - dh * 0.5
        px2 = px1 + dw
        py2 = py1 + dh

        # ---- SIoU loss(decoded, loc_t, weights.sum(-1)) ----
        iw = jnp.maximum(jnp.minimum(px2, tx2) - jnp.maximum(px1, tx1), 0.0)
        ih = jnp.maximum(jnp.minimum(py2, ty2) - jnp.maximum(py1, ty1), 0.0)
        inter = iw * ih
        w2 = tx2 - tx1
        h2 = ty2 - ty1
        union = dw * dh + w2 * h2 - inter + EPS
        iou = inter * pl.reciprocal(union, approx=True)

        s_cw = (tx1 + tx2) * 0.5 - dcx
        s_ch = (ty1 + ty2) * 0.5 - dcy
        inv_sigma = pl.reciprocal(jnp.sqrt(s_cw * s_cw + s_ch * s_ch) + EPS,
                                  approx=True)
        sin_a = jnp.abs(s_ch) * inv_sigma
        sin_b = jnp.abs(s_cw) * inv_sigma
        sin_a = jnp.where(sin_a > 0.7071067811865476, sin_b, sin_a)
        # sin(2*arcsin(sin_a)) = 2*sin_a*sqrt(1-sin_a^2)  (avoids arcsin)
        angle_cost = 2.0 * sin_a * jnp.sqrt(jnp.maximum(1.0 - sin_a * sin_a, 0.0))

        cw_ = jnp.maximum(px2, tx2) - jnp.minimum(px1, tx1) + EPS
        ch_ = jnp.maximum(py2, ty2) - jnp.minimum(py1, ty1) + EPS
        rx = s_cw * pl.reciprocal(cw_, approx=True)
        ry = s_ch * pl.reciprocal(ch_, approx=True)
        gamma_d = 2.0 - angle_cost
        dist_cost = 2.0 - jnp.exp(-gamma_d * rx * rx) - jnp.exp(-gamma_d * ry * ry)

        om_w = jnp.abs(dw - w2) * pl.reciprocal(jnp.maximum(dw, w2) + EPS, approx=True)
        om_h = jnp.abs(dh - h2) * pl.reciprocal(jnp.maximum(dh, h2) + EPS, approx=True)
        qw = 1.0 - jnp.exp(-om_w)
        qh = 1.0 - jnp.exp(-om_h)
        qw2 = qw * qw
        qh2 = qh * qh
        shape_cost = qw2 * qw2 + qh2 * qh2

        siou = iou - 0.5 * (dist_cost + shape_cost)
        # NOTE: weights.sum(-1) == 4*w because the wrapper replicates one scalar
        # weight across the 4 coordinates of each prior.
        loss_iou = jnp.sum((1.0 - siou) * (4.0 * w))

        acc_ref[0] += loss_l1 + loss_iou

    @pl.when(j == pl.num_programs(1) - 1)
    def _():
        sub = jax.lax.broadcasted_iota(jnp.int32, (1, 8, _LANE), 1)
        lane = jax.lax.broadcasted_iota(jnp.int32, (1, 8, _LANE), 2)
        out_ref[...] = jnp.where((sub == 0) & (lane == 0), acc_ref[0], 0.0)


# ----------------------------------------------------------------------------
# Pallas wrappers
# ----------------------------------------------------------------------------
def pairwise_quality(truths, loc_p, priors, gathered_logits):
    """truths (N,G,4) xyxy; loc_p (N,P,4); priors (P,4) cxcywh;
    gathered_logits (N,G,P) own-label class logits (any float dtype).
    Returns column-max-suppressed (regression_quality, classification_quality),
    each (N,G,P) bf16."""
    N, G, _ = truths.shape
    P = priors.shape[0]
    G_pad = _round_up(G, 16)
    PT = min(_QUAL_PT, _round_up(P, _LANE))
    P_pad = _round_up(P, PT)

    truths_p = _pad_axis(truths.astype(jnp.float32), 1, G_pad)
    locp_t = _pad_axis(jnp.transpose(loc_p.astype(jnp.float32), (0, 2, 1)), 2, P_pad)
    priors_t = _pad_axis(priors.astype(jnp.float32).T, 1, P_pad)
    gcls = _pad_axis(_pad_axis(gathered_logits.astype(jnp.bfloat16), 1, G_pad),
                     2, P_pad)

    reg_q, cls_q = pl.pallas_call(
        _quality_kernel,
        out_shape=(jax.ShapeDtypeStruct((N, G_pad, P_pad), jnp.bfloat16),
                   jax.ShapeDtypeStruct((N, G_pad, P_pad), jnp.bfloat16)),
        grid=(N, P_pad // PT),
        in_specs=[
            pl.BlockSpec((1, G_pad, 4), lambda n, j: (n, 0, 0)),
            pl.BlockSpec((1, 4, PT), lambda n, j: (n, 0, j)),
            pl.BlockSpec((4, PT), lambda n, j: (0, j)),          # shared across batch
            pl.BlockSpec((1, G_pad, PT), lambda n, j: (n, 0, j)),
        ],
        out_specs=(pl.BlockSpec((1, G_pad, PT), lambda n, j: (n, 0, j)),
                   pl.BlockSpec((1, G_pad, PT), lambda n, j: (n, 0, j))),
        compiler_params=pltpu.CompilerParams(
            dimension_semantics=("parallel", "parallel"),
            vmem_limit_bytes=_VMEM_LIMIT),
    )(truths_p, locp_t, priors_t, gcls)
    return reg_q[:, :G, :P], cls_q[:, :G, :P]


def gfocal_background_sum(logits):
    """Sum over all logits of BCE(x, 0) * sigmoid(x)^2 (GFocal background term)."""
    n = logits.size
    rows_n = -(-n // _LANE)
    half = max(16, _round_up(-(-rows_n // 2), 16))     # rows per megacore half
    block = min(_GF_ROWS, half)
    half = _round_up(half, block)
    t_steps = half // block
    rows = 2 * half

    x = logits.astype(jnp.bfloat16).reshape(n)
    # pad with very negative logits => ~zero contribution
    x = _pad_axis(x, 0, rows * _LANE, value=-100.0).reshape(rows, _LANE)

    out = pl.pallas_call(
        _gfocal_kernel,
        out_shape=jax.ShapeDtypeStruct((2, 8, _LANE), jnp.float32),
        grid=(2, t_steps),
        in_specs=[pl.BlockSpec((block, _LANE), lambda c, i: (c * t_steps + i, 0))],
        out_specs=pl.BlockSpec((1, 8, _LANE), lambda c, i: (c, 0, 0)),
        scratch_shapes=[pltpu.SMEM((1,), jnp.float32)],
        compiler_params=pltpu.CompilerParams(
            dimension_semantics=("parallel", "arbitrary"),
            vmem_limit_bytes=_VMEM_LIMIT),
    )(x)
    return out[:, 0, 0].sum()


def loc_loss_sum(loc_p, loc_t, priors, w):
    """loc_p/loc_t (N,P,4), priors (P,4) cxcywh, w (N,P) per-coordinate weight
    -> scalar BalancedL1(encode) + SIoU(decode) loss."""
    N, P, _ = loc_p.shape
    PS = -(-P // _LANE)
    PS_pad = _round_up(PS, _LOC_ROWS)
    P_pad = PS_pad * _LANE
    pad_n = P_pad - P

    loc_p = loc_p.astype(jnp.float32)
    loc_t = loc_t.astype(jnp.float32)
    priors = priors.astype(jnp.float32)
    w = w.astype(jnp.float32)
    if pad_n:
        # safe padding values (unit boxes / unit priors, zero weight) => finite math
        pad_box = jnp.tile(jnp.array([[0.0, 0.0, 1.0, 1.0]], jnp.float32), (pad_n, 1))
        pad_prior = jnp.tile(jnp.array([[0.5, 0.5, 1.0, 1.0]], jnp.float32), (pad_n, 1))
        loc_p = jnp.concatenate([loc_p, jnp.zeros((N, pad_n, 4), jnp.float32)], axis=1)
        loc_t = jnp.concatenate([loc_t, jnp.broadcast_to(pad_box, (N, pad_n, 4))], axis=1)
        priors = jnp.concatenate([priors, pad_prior], axis=0)
        w = jnp.concatenate([w, jnp.zeros((N, pad_n), jnp.float32)], axis=1)

    lp4 = jnp.transpose(loc_p, (0, 2, 1)).reshape(N, 4, PS_pad, _LANE)
    lt4 = jnp.transpose(loc_t, (0, 2, 1)).reshape(N, 4, PS_pad, _LANE)
    pr4 = priors.T.reshape(4, PS_pad, _LANE)
    w4 = w.reshape(N, 1, PS_pad, _LANE)

    n_j = PS_pad // _LOC_ROWS
    # per-(image, tile) "has positives" flag -> zero-weight tiles skip all compute
    flags = (w.reshape(N, n_j, _LOC_ROWS * _LANE) > 0.0).any(axis=-1).astype(jnp.int32)

    out = pl.pallas_call(
        _loc_loss_kernel,
        out_shape=jax.ShapeDtypeStruct((N, 8, _LANE), jnp.float32),
        grid_spec=pltpu.PrefetchScalarGridSpec(
            num_scalar_prefetch=1,
            grid=(N, n_j),
            in_specs=[
                pl.BlockSpec((1, 4, _LOC_ROWS, _LANE), lambda n, j, f: (n, 0, j, 0)),
                pl.BlockSpec((1, 4, _LOC_ROWS, _LANE), lambda n, j, f: (n, 0, j, 0)),
                pl.BlockSpec((4, _LOC_ROWS, _LANE), lambda n, j, f: (0, j, 0)),
                pl.BlockSpec((1, 1, _LOC_ROWS, _LANE), lambda n, j, f: (n, 0, j, 0)),
            ],
            out_specs=pl.BlockSpec((1, 8, _LANE), lambda n, j, f: (n, 0, 0)),
            scratch_shapes=[pltpu.SMEM((1,), jnp.float32)],
        ),
        compiler_params=pltpu.CompilerParams(
            dimension_semantics=("parallel", "arbitrary")),
    )(flags, lp4, lt4, pr4, w4)
    return out[:, 0, 0].sum()


# ----------------------------------------------------------------------------
# Plain-JAX glue (matching / assignment)
# ----------------------------------------------------------------------------
def _assign(quality):
    """quality (N,G,P), already column-max suppressed (in-kernel).  Dynamic
    top-k positive selection (+3.0 boost); returns (object index (N,P) int32,
    assignment weight (N,P) f32)."""
    q = quality
    k = min(TOPK, q.shape[-1])
    topk_vals = jax.lax.top_k(q, k)[0]                               # (N,G,k) desc
    num_pos = jnp.clip(
        jnp.floor(topk_vals.astype(jnp.float32).sum(-1)).astype(jnp.int32), 1, k)
    thresh = jnp.take_along_axis(topk_vals, (num_pos - 1)[..., None], axis=-1)
    pos = (q >= thresh) & (q > 0)
    qb = q + 3.0 * pos.astype(q.dtype)
    return qb.argmax(axis=1), qb.max(axis=1).astype(jnp.float32)


def mutual_match(targets_boxes, targets_labels, loc_p, cls_p, priors):
    """Batched mutual matching.  targets_boxes (N,G,4), targets_labels (N,G),
    loc_p (N,P,4), cls_p (N,P,C), priors (P,4 cxcywh)."""
    # per-object own-label class logits gathered in XLA (cheap); sigmoid fused in-kernel
    gathered = jax.vmap(lambda cp, lb: cp[:, lb])(cls_p, targets_labels)   # (N,P,G)
    gathered = jnp.transpose(gathered, (0, 2, 1)).astype(jnp.bfloat16)     # (N,G,P)

    # TODO(synk): exact mutual_match quality formula unavailable; geometric mean of
    #             anchor IoU and predicted own-class probability is used.
    reg_over, cls_qual = pairwise_quality(targets_boxes, loc_p, priors, gathered)

    cls_obj, cls_w = _assign(reg_over)    # regression guides classification targets
    loc_obj, loc_w = _assign(cls_qual)    # classification guides regression targets

    loc_t = jax.vmap(lambda tb, idx: tb[idx])(targets_boxes, loc_obj)      # (N,P,4)
    cls_t = jax.vmap(lambda tl, idx: tl[idx])(targets_labels, cls_obj)     # (N,P)
    return loc_t, cls_t, cls_w, loc_w


def multibox_loss(loc_p, cls_p, priors, targets_boxes, targets_labels):
    """mutual_guide=True forward.
    loc_p (N,P,4), cls_p (N,P,C), priors (P,4 cxcywh),
    targets_boxes (N,G,4 xyxy), targets_labels (N,G) int."""
    loc_t, cls_t, cls_w, loc_w = mutual_match(
        targets_boxes, targets_labels, loc_p, cls_p, priors)

    # ---- localization loss (positives via zero-weight masking) ----
    v = jnp.maximum(loc_w - 3.0, 0.0)                         # (N,P)
    total = jnp.maximum(jnp.sum(v) * 4.0, 1e-12)
    w = v / total                                             # per-coordinate weight
    loss_l = loc_loss_sum(loc_p, loc_t, priors, w)

    # ---- classification (GFocal) loss, decomposed ----
    # dense one-hot targets are never materialized: kernel sums the target==0
    # term over every logit; sparse positive corrections are added in XLA.
    f0_sum = gfocal_background_sum(cls_p)

    cw = jnp.maximum(cls_w - 3.0, 0.0)                        # (N,P)
    pos = cw > 0.0
    x_lab = jnp.take_along_axis(cls_p, cls_t[..., None], axis=-1)[..., 0]  # (N,P)
    p_lab = jax.nn.sigmoid(x_lab)
    sp = jax.nn.softplus(x_lab)                               # BCE(x, 0)
    bce_t = sp - x_lab * cw                                   # BCE(x, cw)
    corr = jnp.sum(jnp.where(pos,
                             bce_t * (cw - p_lab) ** 2 - sp * p_lab * p_lab,
                             0.0))
    num_pos = jnp.sum(pos.astype(jnp.float32))
    # TODO(synk): GFocalLoss normalization not specified in the prompt; use #positives.
    loss_c = (f0_sum + corr) / jnp.maximum(num_pos, 1.0)

    return loss_l + loss_c


# ----------------------------------------------------------------------------
if __name__ == "__main__":
    key = jax.random.PRNGKey(0)
    N, P, C, G = 2, 128, 20, 8
    k1, k2, k3, k4, k5, k6, k7 = jax.random.split(key, 7)

    loc_p = 0.1 * jax.random.normal(k1, (N, P, 4), jnp.float32)
    cls_p = jax.random.normal(k2, (N, P, C), jnp.float32)

    # priors in cxcywh, normalized coordinates
    pc = jax.random.uniform(k3, (P, 2), minval=0.2, maxval=0.8)
    pwh = jax.random.uniform(k4, (P, 2), minval=0.05, maxval=0.3)
    priors = jnp.concatenate([pc, pwh], axis=1).astype(jnp.float32)

    # ground-truth boxes (xyxy) and labels per image
    gc = jax.random.uniform(k5, (N, G, 2), minval=0.25, maxval=0.75)
    gwh = jax.random.uniform(k6, (N, G, 2), minval=0.1, maxval=0.3)
    targets_boxes = jnp.concatenate([gc - gwh * 0.5, gc + gwh * 0.5],
                                    axis=-1).astype(jnp.float32)
    targets_labels = jax.random.randint(k7, (N, G), 0, C)

    loss_fn = jax.jit(multibox_loss)
    loss = loss_fn(loc_p, cls_p, priors, targets_boxes, targets_labels)
    loss = jax.block_until_ready(loss)
    assert jnp.isfinite(loss)
    print("KERNEL_OK")
</pallas_src>

<mosaic_0001>
module attributes {stable_mosaic.version = 11 : i64} {
  func.func @_quality_kernel(%arg0: i32, %arg1: i32, %arg2: memref<1x16x4xf32, #tpu.memory_space<vmem>>, %arg3: memref<1x4x128xf32, #tpu.memory_space<vmem>>, %arg4: memref<4x128xf32, #tpu.memory_space<vmem>>, %arg5: memref<1x16x128xbf16, #tpu.memory_space<vmem>>, %arg6: memref<1x16x128xbf16, #tpu.memory_space<vmem>>, %arg7: memref<1x16x128xbf16, #tpu.memory_space<vmem>>) attributes {dimension_semantics = [#tpu.dimension_semantics<parallel>, #tpu.dimension_semantics<parallel>], iteration_bounds = array<i64: 2, 1>, scalar_prefetch = 0 : i64, scratch_operands = 0 : i64, tpu.core_type = #tpu.core_type<tc>, window_params = [{transform_indices = @transform_0, window_bounds = array<i64: 1, 16, 4>}, {transform_indices = @transform_1, window_bounds = array<i64: 1, 4, 128>}, {transform_indices = @transform_2, window_bounds = array<i64: 4, 128>}, {transform_indices = @transform_3, window_bounds = array<i64: 1, 16, 128>}, {transform_indices = @transform_4, window_bounds = array<i64: 1, 16, 128>}, {transform_indices = @transform_5, window_bounds = array<i64: 1, 16, 128>}]} {
    %c0 = arith.constant 0 : index
    %c0_0 = arith.constant 0 : index
    %c0_1 = arith.constant 0 : index
    %0 = vector.load %arg2[%c0, %c0_0, %c0_1] : memref<1x16x4xf32, #tpu.memory_space<vmem>>, vector<1x16x4xf32>
    %1 = vector.shape_cast %0 : vector<1x16x4xf32> to vector<16x4xf32>
    %c0_2 = arith.constant 0 : index
    %c0_3 = arith.constant 0 : index
    %2 = vector.load %arg4[%c0_2, %c0_3] : memref<4x128xf32, #tpu.memory_space<vmem>>, vector<4x128xf32>
    %3 = vector.extract_strided_slice %1 {offsets = [0, 0], sizes = [16, 1], strides = [1, 1]} : vector<16x4xf32> to vector<16x1xf32>
    %4 = vector.shape_cast %3 : vector<16x1xf32> to vector<16x1xf32>
    %5 = vector.broadcast %4 : vector<16x1xf32> to vector<16x128xf32>
    %6 = vector.extract_strided_slice %1 {offsets = [0, 1], sizes = [16, 1], strides = [1, 1]} : vector<16x4xf32> to vector<16x1xf32>
    %7 = vector.shape_cast %6 : vector<16x1xf32> to vector<16x1xf32>
    %8 = vector.broadcast %7 : vector<16x1xf32> to vector<16x128xf32>
    %9 = vector.extract_strided_slice %1 {offsets = [0, 2], sizes = [16, 1], strides = [1, 1]} : vector<16x4xf32> to vector<16x1xf32>
    %10 = vector.shape_cast %9 : vector<16x1xf32> to vector<16x1xf32>
    %11 = vector.broadcast %10 : vector<16x1xf32> to vector<16x128xf32>
    %12 = vector.extract_strided_slice %1 {offsets = [0, 3], sizes = [16, 1], strides = [1, 1]} : vector<16x4xf32> to vector<16x1xf32>
    %13 = vector.shape_cast %12 : vector<16x1xf32> to vector<16x1xf32>
    %14 = vector.broadcast %13 : vector<16x1xf32> to vector<16x128xf32>
    %15 = vector.extract_strided_slice %1 {offsets = [0, 2], sizes = [16, 1], strides = [1, 1]} : vector<16x4xf32> to vector<16x1xf32>
    %16 = vector.extract_strided_slice %1 {offsets = [0, 0], sizes = [16, 1], strides = [1, 1]} : vector<16x4xf32> to vector<16x1xf32>
    %17 = arith.subf %15, %16 : vector<16x1xf32>
    %18 = vector.extract_strided_slice %1 {offsets = [0, 3], sizes = [16, 1], strides = [1, 1]} : vector<16x4xf32> to vector<16x1xf32>
    %19 = vector.extract_strided_slice %1 {offsets = [0, 1], sizes = [16, 1], strides = [1, 1]} : vector<16x4xf32> to vector<16x1xf32>
    %20 = arith.subf %18, %19 : vector<16x1xf32>
    %21 = arith.mulf %17, %20 : vector<16x1xf32>
    %22 = vector.shape_cast %21 : vector<16x1xf32> to vector<16x1xf32>
    %23 = vector.broadcast %22 : vector<16x1xf32> to vector<16x128xf32>
    %24 = vector.extract_strided_slice %2 {offsets = [0, 0], sizes = [1, 128], strides = [1, 1]} : vector<4x128xf32> to vector<1x128xf32>
    %25 = vector.extract_strided_slice %2 {offsets = [1, 0], sizes = [1, 128], strides = [1, 1]} : vector<4x128xf32> to vector<1x128xf32>
    %26 = vector.extract_strided_slice %2 {offsets = [2, 0], sizes = [1, 128], strides = [1, 1]} : vector<4x128xf32> to vector<1x128xf32>
    %27 = vector.extract_strided_slice %2 {offsets = [3, 0], sizes = [1, 128], strides = [1, 1]} : vector<4x128xf32> to vector<1x128xf32>
    %c0_4 = arith.constant 0 : index
    %c0_5 = arith.constant 0 : index
    %c0_6 = arith.constant 0 : index
    %28 = vector.load %arg3[%c0_4, %c0_5, %c0_6] : memref<1x4x128xf32, #tpu.memory_space<vmem>>, vector<1x4x128xf32>
    %29 = vector.shape_cast %28 : vector<1x4x128xf32> to vector<4x128xf32>
    %30 = vector.extract_strided_slice %29 {offsets = [0, 0], sizes = [1, 128], strides = [1, 1]} : vector<4x128xf32> to vector<1x128xf32>
    %cst = arith.constant 1.000000e-01 : f32
    %31 = vector.broadcast %cst : f32 to vector<1x128xf32>
    %32 = arith.mulf %30, %31 : vector<1x128xf32>
    %33 = arith.mulf %32, %26 : vector<1x128xf32>
    %34 = arith.addf %24, %33 : vector<1x128xf32>
    %35 = vector.extract_strided_slice %29 {offsets = [1, 0], sizes = [1, 128], strides = [1, 1]} : vector<4x128xf32> to vector<1x128xf32>
    %cst_7 = arith.constant 1.000000e-01 : f32
    %36 = vector.broadcast %cst_7 : f32 to vector<1x128xf32>
    %37 = arith.mulf %35, %36 : vector<1x128xf32>
    %38 = arith.mulf %37, %27 : vector<1x128xf32>
    %39 = arith.addf %25, %38 : vector<1x128xf32>
    %40 = vector.extract_strided_slice %29 {offsets = [2, 0], sizes = [1, 128], strides = [1, 1]} : vector<4x128xf32> to vector<1x128xf32>
    %cst_8 = arith.constant 2.000000e-01 : f32
    %41 = vector.broadcast %cst_8 : f32 to vector<1x128xf32>
    %42 = arith.mulf %40, %41 : vector<1x128xf32>
    %43 = math.exp %42 : vector<1x128xf32>
    %44 = arith.mulf %26, %43 : vector<1x128xf32>
    %45 = vector.extract_strided_slice %29 {offsets = [3, 0], sizes = [1, 128], strides = [1, 1]} : vector<4x128xf32> to vector<1x128xf32>
    %cst_9 = arith.constant 2.000000e-01 : f32
    %46 = vector.broadcast %cst_9 : f32 to vector<1x128xf32>
    %47 = arith.mulf %45, %46 : vector<1x128xf32>
    %48 = math.exp %47 : vector<1x128xf32>
    %49 = arith.mulf %27, %48 : vector<1x128xf32>
    %cst_10 = arith.constant 5.000000e-01 : f32
    %50 = vector.broadcast %cst_10 : f32 to vector<1x128xf32>
    %51 = arith.mulf %50, %44 : vector<1x128xf32>
    %52 = arith.subf %34, %51 : vector<1x128xf32>
    %cst_11 = arith.constant 5.000000e-01 : f32
    %53 = vector.broadcast %cst_11 : f32 to vector<1x128xf32>
    %54 = arith.mulf %53, %49 : vector<1x128xf32>
    %55 = arith.subf %39, %54 : vector<1x128xf32>
    %56 = arith.addf %52, %44 : vector<1x128xf32>
    %57 = arith.addf %55, %49 : vector<1x128xf32>
    %58 = arith.mulf %44, %49 : vector<1x128xf32>
    %59 = vector.broadcast %56 : vector<1x128xf32> to vector<16x128xf32>
    %60 = arith.minimumf %11, %59 : vector<16x128xf32>
    %61 = vector.broadcast %52 : vector<1x128xf32> to vector<16x128xf32>
    %62 = arith.maximumf %5, %61 : vector<16x128xf32>
    %63 = arith.subf %60, %62 : vector<16x128xf32>
    %cst_12 = arith.constant 0.000000e+00 : f32
    %64 = vector.broadcast %cst_12 : f32 to vector<16x128xf32>
    %65 = arith.maximumf %63, %64 : vector<16x128xf32>
    %66 = vector.broadcast %57 : vector<1x128xf32> to vector<16x128xf32>
    %67 = arith.minimumf %14, %66 : vector<16x128xf32>
    %68 = vector.broadcast %55 : vector<1x128xf32> to vector<16x128xf32>
    %69 = arith.maximumf %8, %68 : vector<16x128xf32>
    %70 = arith.subf %67, %69 : vector<16x128xf32>
    %cst_13 = arith.constant 0.000000e+00 : f32
    %71 = vector.broadcast %cst_13 : f32 to vector<16x128xf32>
    %72 = arith.maximumf %70, %71 : vector<16x128xf32>
    %73 = arith.mulf %65, %72 : vector<16x128xf32>
    %74 = vector.broadcast %58 : vector<1x128xf32> to vector<16x128xf32>
    %75 = arith.addf %23, %74 : vector<16x128xf32>
    %76 = arith.subf %75, %73 : vector<16x128xf32>
    %cst_14 = arith.constant 1.000000e-07 : f32
    %77 = vector.broadcast %cst_14 : f32 to vector<16x128xf32>
    %78 = arith.addf %76, %77 : vector<16x128xf32>
    %79 = tpu.reciprocal %78 {approx = true} : vector<16x128xf32> -> vector<16x128xf32>
    %80 = arith.mulf %73, %79 : vector<16x128xf32>
    %cst_15 = arith.constant dense<0xFF800000> : vector<128xf32>
    %81 = vector.multi_reduction <maximumf>, %80, %cst_15 [0] : vector<16x128xf32> to vector<128xf32>
    %82 = vector.shape_cast %81 : vector<128xf32> to vector<1x128xf32>
    %83 = vector.broadcast %82 : vector<1x128xf32> to vector<16x128xf32>
    %84 = arith.cmpf oeq, %80, %83 : vector<16x128xf32>
    %cst_16 = arith.constant 0.000000e+00 : f32
    %85 = vector.broadcast %cst_16 : f32 to vector<16x128xf32>
    %86 = arith.select %84, %80, %85 : vector<16x128xi1>, vector<16x128xf32>
    %87 = arith.truncf %86 : vector<16x128xf32> to vector<16x128xbf16>
    %c0_17 = arith.constant 0 : index
    %c0_18 = arith.constant 0 : index
    %c0_19 = arith.constant 0 : index
    %88 = vector.load %arg6[%c0_17, %c0_18, %c0_19] : memref<1x16x128xbf16, #tpu.memory_space<vmem>>, vector<1x16x128xbf16>
    %89 = vector.shape_cast %88 : vector<1x16x128xbf16> to vector<16x128xbf16>
    %90 = vector.shape_cast %87 : vector<16x128xbf16> to vector<1x16x128xbf16>
    tpu.vector_store %arg6[%c0_17, %c0_18, %c0_19], %90 {strides = array<i32>} : memref<1x16x128xbf16, #tpu.memory_space<vmem>>, vector<1x16x128xbf16>,
    %cst_20 = arith.constant 5.000000e-01 : f32
    %91 = vector.broadcast %cst_20 : f32 to vector<1x128xf32>
    %92 = arith.mulf %91, %26 : vector<1x128xf32>
    %93 = arith.subf %24, %92 : vector<1x128xf32>
    %cst_21 = arith.constant 5.000000e-01 : f32
    %94 = vector.broadcast %cst_21 : f32 to vector<1x128xf32>
    %95 = arith.mulf %94, %27 : vector<1x128xf32>
    %96 = arith.subf %25, %95 : vector<1x128xf32>
    %97 = arith.addf %93, %26 : vector<1x128xf32>
    %98 = arith.addf %96, %27 : vector<1x128xf32>
    %99 = arith.mulf %26, %27 : vector<1x128xf32>
    %100 = vector.broadcast %97 : vector<1x128xf32> to vector<16x128xf32>
    %101 = arith.minimumf %11, %100 : vector<16x128xf32>
    %102 = vector.broadcast %93 : vector<1x128xf32> to vector<16x128xf32>
    %103 = arith.maximumf %5, %102 : vector<16x128xf32>
    %104 = arith.subf %101, %103 : vector<16x128xf32>
    %cst_22 = arith.constant 0.000000e+00 : f32
    %105 = vector.broadcast %cst_22 : f32 to vector<16x128xf32>
    %106 = arith.maximumf %104, %105 : vector<16x128xf32>
    %107 = vector.broadcast %98 : vector<1x128xf32> to vector<16x128xf32>
    %108 = arith.minimumf %14, %107 : vector<16x128xf32>
    %109 = vector.broadcast %96 : vector<1x128xf32> to vector<16x128xf32>
    %110 = arith.maximumf %8, %109 : vector<16x128xf32>
    %111 = arith.subf %108, %110 : vector<16x128xf32>
    %cst_23 = arith.constant 0.000000e+00 : f32
    %112 = vector.broadcast %cst_23 : f32 to vector<16x128xf32>
    %113 = arith.maximumf %111, %112 : vector<16x128xf32>
    %114 = arith.mulf %106, %113 : vector<16x128xf32>
    %115 = vector.broadcast %99 : vector<1x128xf32> to vector<16x128xf32>
    %116 = arith.addf %23, %115 : vector<16x128xf32>
    %117 = arith.subf %116, %114 : vector<16x128xf32>
    %cst_24 = arith.constant 1.000000e-07 : f32
    %118 = vector.broadcast %cst_24 : f32 to vector<16x128xf32>
    %119 = arith.addf %117, %118 : vector<16x128xf32>
    %120 = tpu.reciprocal %119 {approx = true} : vector<16x128xf32> -> vector<16x128xf32>
    %121 = arith.mulf %114, %120 : vector<16x128xf32>
    %c0_25 = arith.constant 0 : index
    %c0_26 = arith.constant 0 : index
    %c0_27 = arith.constant 0 : index
    %122 = vector.load %arg5[%c0_25, %c0_26, %c0_27] : memref<1x16x128xbf16, #tpu.memory_space<vmem>>, vector<1x16x128xbf16>
    %123 = vector.shape_cast %122 : vector<1x16x128xbf16> to vector<16x128xbf16>
    %124 = arith.extf %123 : vector<16x128xbf16> to vector<16x128xf32>
    %125 = math.absf %124 : vector<16x128xf32>
    %cst_28 = arith.constant 0.000000e+00 : f32
    %126 = vector.broadcast %cst_28 : f32 to vector<16x128xf32>
    %127 = arith.subf %126, %125 : vector<16x128xf32>
    %128 = math.exp %127 : vector<16x128xf32>
    %cst_29 = arith.constant 1.000000e+00 : f32
    %129 = vector.broadcast %cst_29 : f32 to vector<16x128xf32>
    %130 = arith.addf %129, %128 : vector<16x128xf32>
    %131 = tpu.reciprocal %130 {approx = true} : vector<16x128xf32> -> vector<16x128xf32>
    %cst_30 = arith.constant 0.000000e+00 : f32
    %132 = vector.broadcast %cst_30 : f32 to vector<16x128xf32>
    %133 = arith.cmpf oge, %124, %132 : vector<16x128xf32>
    %134 = arith.mulf %128, %131 : vector<16x128xf32>
    %135 = arith.select %133, %131, %134 : vector<16x128xi1>, vector<16x128xf32>
    %136 = arith.mulf %121, %135 : vector<16x128xf32>
    %cst_31 = arith.constant 0.000000e+00 : f32
    %137 = vector.broadcast %cst_31 : f32 to vector<16x128xf32>
    %138 = arith.maximumf %136, %137 : vector<16x128xf32>
    %139 = math.sqrt %138 : vector<16x128xf32>
    %cst_32 = arith.constant dense<0xFF800000> : vector<128xf32>
    %140 = vector.multi_reduction <maximumf>, %139, %cst_32 [0] : vector<16x128xf32> to vector<128xf32>
    %141 = vector.shape_cast %140 : vector<128xf32> to vector<1x128xf32>
    %142 = vector.broadcast %141 : vector<1x128xf32> to vector<16x128xf32>
    %143 = arith.cmpf oeq, %139, %142 : vector<16x128xf32>
    %cst_33 = arith.constant 0.000000e+00 : f32
    %144 = vector.broadcast %cst_33 : f32 to vector<16x128xf32>
    %145 = arith.select %143, %139, %144 : vector<16x128xi1>, vector<16x128xf32>
    %146 = arith.truncf %145 : vector<16x128xf32> to vector<16x128xbf16>
    %c0_34 = arith.constant 0 : index
    %c0_35 = arith.constant 0 : index
    %c0_36 = arith.constant 0 : index
    %147 = vector.load %arg7[%c0_34, %c0_35, %c0_36] : memref<1x16x128xbf16, #tpu.memory_space<vmem>>, vector<1x16x128xbf16>
    %148 = vector.shape_cast %147 : vector<1x16x128xbf16> to vector<16x128xbf16>
    %149 = vector.shape_cast %146 : vector<16x128xbf16> to vector<1x16x128xbf16>
    tpu.vector_store %arg7[%c0_34, %c0_35, %c0_36], %149 {strides = array<i32>} : memref<1x16x128xbf16, #tpu.memory_space<vmem>>, vector<1x16x128xbf16>,
    return
  }
  func.func @transform_0(%arg0: i32, %arg1: i32) -> (i32, i32, i32) {
    %c0_i32 = arith.constant 0 : i32
    %c0_i32_0 = arith.constant 0 : i32
    %c0_i32_1 = arith.constant 0 : i32
    return %arg0, %c0_i32, %c0_i32_0 : i32, i32, i32
  }
  func.func @transform_1(%arg0: i32, %arg1: i32) -> (i32, i32, i32) {
    %c0_i32 = arith.constant 0 : i32
    %c0_i32_0 = arith.constant 0 : i32
    return %arg0, %c0_i32, %arg1 : i32, i32, i32
  }
  func.func @transform_2(%arg0: i32, %arg1: i32) -> (i32, i32) {
    %c0_i32 = arith.constant 0 : i32
    %c0_i32_0 = arith.constant 0 : i32
    return %c0_i32, %arg1 : i32, i32
  }
  func.func @transform_3(%arg0: i32, %arg1: i32) -> (i32, i32, i32) {
    %c0_i32 = arith.constant 0 : i32
    %c0_i32_0 = arith.constant 0 : i32
    return %arg0, %c0_i32, %arg1 : i32, i32, i32
  }
  func.func @transform_4(%arg0: i32, %arg1: i32) -> (i32, i32, i32) {
    %c0_i32 = arith.constant 0 : i32
    %c0_i32_0 = arith.constant 0 : i32
    return %arg0, %c0_i32, %arg1 : i32, i32, i32
  }
  func.func @transform_5(%arg0: i32, %arg1: i32) -> (i32, i32, i32) {
    %c0_i32 = arith.constant 0 : i32
    %c0_i32_0 = arith.constant 0 : i32
    return %arg0, %c0_i32, %arg1 : i32, i32, i32
  }
}

module attributes {stable_mosaic.version = 11 : i64} {
  func.func @_gfocal_kernel(%arg0: i32, %arg1: i32, %arg2: memref<32x128xbf16, #tpu.memory_space<vmem>>, %arg3: memref<1x8x128xf32, #tpu.memory_space<vmem>>, %arg4: memref<1xf32, #tpu.memory_space<smem>>) attributes {dimension_semantics = [#tpu.dimension_semantics<parallel>, #tpu.dimension_semantics<arbitrary>], iteration_bounds = array<i64: 2, 1>, scalar_prefetch = 0 : i64, scratch_operands = 1 : i64, tpu.core_type = #tpu.core_type<tc>, window_params = [{transform_indices = @transform_0, window_bounds = array<i64: 32, 128>}, {transform_indices = @transform_1, window_bounds = array<i64: 1, 8, 128>}]} {
    %c0_i32 = arith.constant 0 : i32
    %0 = arith.cmpi eq, %arg1, %c0_i32 : i32
    %1 = arith.extui %0 : i1 to i32
    %c0_i32_0 = arith.constant 0 : i32
    %2 = arith.cmpi ne, %1, %c0_i32_0 : i32
    scf.if %2 {
      %cst_11 = arith.constant 0.000000e+00 : f32
      %c0_12 = arith.constant 0 : index
      %34 = memref.load %arg4[%c0_12] : memref<1xf32, #tpu.memory_space<smem>>
      memref.store %cst_11, %arg4[%c0_12] : memref<1xf32, #tpu.memory_space<smem>>
    } else {
    }
    %c0 = arith.constant 0 : index
    %c0_1 = arith.constant 0 : index
    %3 = vector.load %arg2[%c0, %c0_1] : memref<32x128xbf16, #tpu.memory_space<vmem>>, vector<32x128xbf16>
    %4 = arith.extf %3 : vector<32x128xbf16> to vector<32x128xf32>
    %5 = math.absf %4 : vector<32x128xf32>
    %cst = arith.constant 0.000000e+00 : f32
    %6 = vector.broadcast %cst : f32 to vector<32x128xf32>
    %7 = arith.subf %6, %5 : vector<32x128xf32>
    %8 = math.exp %7 : vector<32x128xf32>
    %cst_2 = arith.constant 1.000000e+00 : f32
    %9 = vector.broadcast %cst_2 : f32 to vector<32x128xf32>
    %10 = arith.addf %9, %8 : vector<32x128xf32>
    %11 = tpu.reciprocal %10 {approx = true} : vector<32x128xf32> -> vector<32x128xf32>
    %cst_3 = arith.constant 0.000000e+00 : f32
    %12 = vector.broadcast %cst_3 : f32 to vector<32x128xf32>
    %13 = arith.cmpf oge, %4, %12 : vector<32x128xf32>
    %14 = arith.mulf %8, %11 : vector<32x128xf32>
    %15 = arith.select %13, %11, %14 : vector<32x128xi1>, vector<32x128xf32>
    %cst_4 = arith.constant 0.000000e+00 : f32
    %16 = vector.broadcast %cst_4 : f32 to vector<32x128xf32>
    %17 = arith.maximumf %4, %16 : vector<32x128xf32>
    %cst_5 = arith.constant 1.000000e+00 : f32
    %18 = vector.broadcast %cst_5 : f32 to vector<32x128xf32>
    %19 = arith.addf %18, %8 : vector<32x128xf32>
    %20 = math.log %19 : vector<32x128xf32>
    %21 = arith.addf %17, %20 : vector<32x128xf32>
    %c0_6 = arith.constant 0 : index
    %22 = memref.load %arg4[%c0_6] : memref<1xf32, #tpu.memory_space<smem>>
    %23 = arith.mulf %21, %15 : vector<32x128xf32>
    %24 = arith.mulf %23, %15 : vector<32x128xf32>
    %25 = vector.shape_cast %24 : vector<32x128xf32> to vector<1x32x128xf32>
    %cst_7 = arith.constant dense<0.000000e+00> : vector<1xf32>
    %26 = vector.multi_reduction <add>, %25, %cst_7 [1, 2] : vector<1x32x128xf32> to vector<1xf32>
    %27 = vector.shape_cast %26 : vector<1xf32> to vector<1x1x1xf32>
    %28 = vector.extract %27[0, 0, 0] : f32 from vector<1x1x1xf32>
    %29 = arith.addf %22, %28 : f32
    %c0_8 = arith.constant 0 : index
    %30 = memref.load %arg4[%c0_8] : memref<1xf32, #tpu.memory_space<smem>>
    memref.store %29, %arg4[%c0_8] : memref<1xf32, #tpu.memory_space<smem>>
    %c0_i32_9 = arith.constant 0 : i32
    %31 = arith.cmpi eq, %arg1, %c0_i32_9 : i32
    %32 = arith.extui %31 : i1 to i32
    %c0_i32_10 = arith.constant 0 : i32
    %33 = arith.cmpi ne, %32, %c0_i32_10 : i32
    scf.if %33 {
      %34 = tpu.iota {dimensions = array<i32: 1>} : vector<1x8x128xi32>
      %35 = tpu.iota {dimensions = array<i32: 2>} : vector<1x8x128xi32>
      %c0_i32_11 = arith.constant 0 : i32
      %36 = vector.broadcast %c0_i32_11 : i32 to vector<1x8x128xi32>
      %37 = arith.cmpi eq, %34, %36 : vector<1x8x128xi32>
      %c0_i32_12 = arith.constant 0 : i32
      %38 = vector.broadcast %c0_i32_12 : i32 to vector<1x8x128xi32>
      %39 = arith.cmpi eq, %35, %38 : vector<1x8x128xi32>
      %40 = arith.andi %37, %39 : vector<1x8x128xi1>
      %c0_13 = arith.constant 0 : index
      %41 = memref.load %arg4[%c0_13] : memref<1xf32, #tpu.memory_space<smem>>
      %cst_14 = arith.constant 0.000000e+00 : f32
      %42 = vector.broadcast %41 : f32 to vector<1x8x128xf32>
      %43 = vector.broadcast %cst_14 : f32 to vector<1x8x128xf32>
      %44 = arith.select %40, %42, %43 : vector<1x8x128xi1>, vector<1x8x128xf32>
      %c0_15 = arith.constant 0 : index
      %c0_16 = arith.constant 0 : index
      %c0_17 = arith.constant 0 : index
      %45 = vector.load %arg3[%c0_15, %c0_16, %c0_17] : memref<1x8x128xf32, #tpu.memory_space<vmem>>, vector<1x8x128xf32>
      tpu.vector_store %arg3[%c0_15, %c0_16, %c0_17], %44 {strides = array<i32>} : memref<1x8x128xf32, #tpu.memory_space<vmem>>, vector<1x8x128xf32>,
    } else {
    }
    return
  }
  func.func @transform_0(%arg0: i32, %arg1: i32) -> (i32, i32) {
    %c1_i32 = arith.constant 1 : i32
    %0 = arith.muli %arg0, %c1_i32 : i32
    %1 = arith.addi %0, %arg1 : i32
    %c0_i32 = arith.constant 0 : i32
    %c0_i32_0 = arith.constant 0 : i32
    return %1, %c0_i32 : i32, i32
  }
  func.func @transform_1(%arg0: i32, %arg1: i32) -> (i32, i32, i32) {
    %c0_i32 = arith.constant 0 : i32
    %c0_i32_0 = arith.constant 0 : i32
    %c0_i32_1 = arith.constant 0 : i32
    return %arg0, %c0_i32, %c0_i32_0 : i32, i32, i32
  }
}

module attributes {stable_mosaic.version = 11 : i64} {
  func.func @_loc_loss_kernel(%arg0: i32, %arg1: i32, %arg2: memref<2x1xi32, #tpu.memory_space<smem>>, %arg3: memref<1x4x8x128xf32, #tpu.memory_space<vmem>>, %arg4: memref<1x4x8x128xf32, #tpu.memory_space<vmem>>, %arg5: memref<4x8x128xf32, #tpu.memory_space<vmem>>, %arg6: memref<1x1x8x128xf32, #tpu.memory_space<vmem>>, %arg7: memref<1x8x128xf32, #tpu.memory_space<vmem>>, %arg8: memref<1xf32, #tpu.memory_space<smem>>) attributes {dimension_semantics = [#tpu.dimension_semantics<parallel>, #tpu.dimension_semantics<arbitrary>], iteration_bounds = array<i64: 2, 1>, scalar_prefetch = 1 : i64, scratch_operands = 1 : i64, tpu.core_type = #tpu.core_type<tc>, window_params = [{transform_indices = @transform_0, window_bounds = array<i64: 1, 4, 8, 128>}, {transform_indices = @transform_1, window_bounds = array<i64: 1, 4, 8, 128>}, {transform_indices = @transform_2, window_bounds = array<i64: 4, 8, 128>}, {transform_indices = @transform_3, window_bounds = array<i64: 1, 1, 8, 128>}, {transform_indices = @transform_4, window_bounds = array<i64: 1, 8, 128>}]} {
    %c0_i32 = arith.constant 0 : i32
    %0 = arith.cmpi eq, %arg1, %c0_i32 : i32
    %1 = arith.extui %0 : i1 to i32
    %c0_i32_0 = arith.constant 0 : i32
    %2 = arith.cmpi ne, %1, %c0_i32_0 : i32
    scf.if %2 {
      %cst = arith.constant 0.000000e+00 : f32
      %c0 = arith.constant 0 : index
      %12 = memref.load %arg8[%c0] : memref<1xf32, #tpu.memory_space<smem>>
      memref.store %cst, %arg8[%c0] : memref<1xf32, #tpu.memory_space<smem>>
    } else {
    }
    %3 = arith.index_cast %arg0 : i32 to index
    %4 = arith.index_cast %arg1 : i32 to index
    %5 = memref.load %arg2[%3, %4] : memref<2x1xi32, #tpu.memory_space<smem>>
    %c0_i32_1 = arith.constant 0 : i32
    %6 = arith.cmpi ne, %5, %c0_i32_1 : i32
    %7 = arith.extui %6 : i1 to i32
    %c0_i32_2 = arith.constant 0 : i32
    %8 = arith.cmpi ne, %7, %c0_i32_2 : i32
    scf.if %8 {
      %c0 = arith.constant 0 : index
      %c0_5 = arith.constant 0 : index
      %c0_6 = arith.constant 0 : index
      %c0_7 = arith.constant 0 : index
      %12 = vector.load %arg3[%c0, %c0_5, %c0_6, %c0_7] : memref<1x4x8x128xf32, #tpu.memory_space<vmem>>, vector<1x4x8x128xf32>
      %13 = vector.shape_cast %12 : vector<1x4x8x128xf32> to vector<4x8x128xf32>
      %c0_8 = arith.constant 0 : index
      %c0_9 = arith.constant 0 : index
      %c0_10 = arith.constant 0 : index
      %c0_11 = arith.constant 0 : index
      %14 = vector.load %arg4[%c0_8, %c0_9, %c0_10, %c0_11] : memref<1x4x8x128xf32, #tpu.memory_space<vmem>>, vector<1x4x8x128xf32>
      %15 = vector.shape_cast %14 : vector<1x4x8x128xf32> to vector<4x8x128xf32>
      %c0_12 = arith.constant 0 : index
      %c0_13 = arith.constant 0 : index
      %c0_14 = arith.constant 0 : index
      %16 = vector.load %arg5[%c0_12, %c0_13, %c0_14] : memref<4x8x128xf32, #tpu.memory_space<vmem>>, vector<4x8x128xf32>
      %c0_15 = arith.constant 0 : index
      %c0_16 = arith.constant 0 : index
      %c0_17 = arith.constant 0 : index
      %c0_18 = arith.constant 0 : index
      %17 = vector.load %arg6[%c0_15, %c0_16, %c0_17, %c0_18] : memref<1x1x8x128xf32, #tpu.memory_space<vmem>>, vector<1x1x8x128xf32>
      %18 = vector.shape_cast %17 : vector<1x1x8x128xf32> to vector<8x128xf32>
      %19 = vector.extract_strided_slice %16 {offsets = [0, 0, 0], sizes = [1, 8, 128], strides = [1, 1, 1]} : vector<4x8x128xf32> to vector<1x8x128xf32>
      %20 = vector.shape_cast %19 : vector<1x8x128xf32> to vector<8x128xf32>
      %21 = vector.extract_strided_slice %16 {offsets = [1, 0, 0], sizes = [1, 8, 128], strides = [1, 1, 1]} : vector<4x8x128xf32> to vector<1x8x128xf32>
      %22 = vector.shape_cast %21 : vector<1x8x128xf32> to vector<8x128xf32>
      %23 = vector.extract_strided_slice %16 {offsets = [2, 0, 0], sizes = [1, 8, 128], strides = [1, 1, 1]} : vector<4x8x128xf32> to vector<1x8x128xf32>
      %24 = vector.shape_cast %23 : vector<1x8x128xf32> to vector<8x128xf32>
      %cst = arith.constant 1.000000e-07 : f32
      %25 = vector.broadcast %cst : f32 to vector<8x128xf32>
      %26 = arith.maximumf %24, %25 : vector<8x128xf32>
      %27 = vector.extract_strided_slice %16 {offsets = [3, 0, 0], sizes = [1, 8, 128], strides = [1, 1, 1]} : vector<4x8x128xf32> to vector<1x8x128xf32>
      %28 = vector.shape_cast %27 : vector<1x8x128xf32> to vector<8x128xf32>
      %cst_19 = arith.constant 1.000000e-07 : f32
      %29 = vector.broadcast %cst_19 : f32 to vector<8x128xf32>
      %30 = arith.maximumf %28, %29 : vector<8x128xf32>
      %31 = vector.extract_strided_slice %15 {offsets = [0, 0, 0], sizes = [1, 8, 128], strides = [1, 1, 1]} : vector<4x8x128xf32> to vector<1x8x128xf32>
      %32 = vector.shape_cast %31 : vector<1x8x128xf32> to vector<8x128xf32>
      %33 = vector.extract_strided_slice %15 {offsets = [1, 0, 0], sizes = [1, 8, 128], strides = [1, 1, 1]} : vector<4x8x128xf32> to vector<1x8x128xf32>
      %34 = vector.shape_cast %33 : vector<1x8x128xf32> to vector<8x128xf32>
      %35 = vector.extract_strided_slice %15 {offsets = [2, 0, 0], sizes = [1, 8, 128], strides = [1, 1, 1]} : vector<4x8x128xf32> to vector<1x8x128xf32>
      %36 = vector.shape_cast %35 : vector<1x8x128xf32> to vector<8x128xf32>
      %37 = vector.extract_strided_slice %15 {offsets = [3, 0, 0], sizes = [1, 8, 128], strides = [1, 1, 1]} : vector<4x8x128xf32> to vector<1x8x128xf32>
      %38 = vector.shape_cast %37 : vector<1x8x128xf32> to vector<8x128xf32>
      %39 = vector.extract_strided_slice %13 {offsets = [0, 0, 0], sizes = [1, 8, 128], strides = [1, 1, 1]} : vector<4x8x128xf32> to vector<1x8x128xf32>
      %40 = vector.shape_cast %39 : vector<1x8x128xf32> to vector<8x128xf32>
      %41 = vector.extract_strided_slice %13 {offsets = [1, 0, 0], sizes = [1, 8, 128], strides = [1, 1, 1]} : vector<4x8x128xf32> to vector<1x8x128xf32>
      %42 = vector.shape_cast %41 : vector<1x8x128xf32> to vector<8x128xf32>
      %43 = vector.extract_strided_slice %13 {offsets = [2, 0, 0], sizes = [1, 8, 128], strides = [1, 1, 1]} : vector<4x8x128xf32> to vector<1x8x128xf32>
      %44 = vector.shape_cast %43 : vector<1x8x128xf32> to vector<8x128xf32>
      %45 = vector.extract_strided_slice %13 {offsets = [3, 0, 0], sizes = [1, 8, 128], strides = [1, 1, 1]} : vector<4x8x128xf32> to vector<1x8x128xf32>
      %46 = vector.shape_cast %45 : vector<1x8x128xf32> to vector<8x128xf32>
      %47 = arith.subf %36, %32 : vector<8x128xf32>
      %cst_20 = arith.constant 1.000000e-07 : f32
      %48 = vector.broadcast %cst_20 : f32 to vector<8x128xf32>
      %49 = arith.maximumf %47, %48 : vector<8x128xf32>
      %50 = arith.subf %38, %34 : vector<8x128xf32>
      %cst_21 = arith.constant 1.000000e-07 : f32
      %51 = vector.broadcast %cst_21 : f32 to vector<8x128xf32>
      %52 = arith.maximumf %50, %51 : vector<8x128xf32>
      %53 = arith.addf %32, %36 : vector<8x128xf32>
      %cst_22 = arith.constant 5.000000e-01 : f32
      %54 = vector.broadcast %cst_22 : f32 to vector<8x128xf32>
      %55 = arith.mulf %53, %54 : vector<8x128xf32>
      %56 = arith.subf %55, %20 : vector<8x128xf32>
      %cst_23 = arith.constant 1.000000e-01 : f32
      %57 = vector.broadcast %cst_23 : f32 to vector<8x128xf32>
      %58 = arith.mulf %57, %26 : vector<8x128xf32>
      %59 = arith.divf %56, %58 : vector<8x128xf32>
      %60 = arith.addf %34, %38 : vector<8x128xf32>
      %cst_24 = arith.constant 5.000000e-01 : f32
      %61 = vector.broadcast %cst_24 : f32 to vector<8x128xf32>
      %62 = arith.mulf %60, %61 : vector<8x128xf32>
      %63 = arith.subf %62, %22 : vector<8x128xf32>
      %cst_25 = arith.constant 1.000000e-01 : f32
      %64 = vector.broadcast %cst_25 : f32 to vector<8x128xf32>
      %65 = arith.mulf %64, %30 : vector<8x128xf32>
      %66 = arith.divf %63, %65 : vector<8x128xf32>
      %67 = arith.divf %49, %26 : vector<8x128xf32>
      %68 = math.log %67 : vector<8x128xf32>
      %cst_26 = arith.constant 2.000000e-01 : f32
      %69 = vector.broadcast %cst_26 : f32 to vector<8x128xf32>
      %70 = arith.divf %68, %69 : vector<8x128xf32>
      %71 = arith.divf %52, %30 : vector<8x128xf32>
      %72 = math.log %71 : vector<8x128xf32>
      %cst_27 = arith.constant 2.000000e-01 : f32
      %73 = vector.broadcast %cst_27 : f32 to vector<8x128xf32>
      %74 = arith.divf %72, %73 : vector<8x128xf32>
      %75 = arith.subf %40, %59 : vector<8x128xf32>
      %76 = math.absf %75 : vector<8x128xf32>
      %cst_28 = arith.constant 19.085537 : f32
      %77 = vector.broadcast %cst_28 : f32 to vector<8x128xf32>
      %78 = arith.mulf %77, %76 : vector<8x128xf32>
      %cst_29 = arith.constant 1.000000e+00 : f32
      %79 = vector.broadcast %cst_29 : f32 to vector<8x128xf32>
      %80 = arith.addf %78, %79 : vector<8x128xf32>
      %cst_30 = arith.constant 0.0261978488 : f32
      %81 = vector.broadcast %cst_30 : f32 to vector<8x128xf32>
      %82 = arith.mulf %81, %80 : vector<8x128xf32>
      %cst_31 = arith.constant 19.085537 : f32
      %83 = vector.broadcast %cst_31 : f32 to vector<8x128xf32>
      %84 = arith.mulf %83, %76 : vector<8x128xf32>
      %cst_32 = arith.constant 1.100000e-01 : f32
      %85 = vector.broadcast %cst_32 : f32 to vector<8x128xf32>
      %86 = arith.divf %84, %85 : vector<8x128xf32>
      %cst_33 = arith.constant 1.000000e+00 : f32
      %87 = vector.broadcast %cst_33 : f32 to vector<8x128xf32>
      %88 = arith.addf %86, %87 : vector<8x128xf32>
      %89 = math.log %88 : vector<8x128xf32>
      %90 = arith.mulf %82, %89 : vector<8x128xf32>
      %cst_34 = arith.constant 5.000000e-01 : f32
      %91 = vector.broadcast %cst_34 : f32 to vector<8x128xf32>
      %92 = arith.mulf %91, %76 : vector<8x128xf32>
      %93 = arith.subf %90, %92 : vector<8x128xf32>
      %cst_35 = arith.constant 1.500000e+00 : f32
      %94 = vector.broadcast %cst_35 : f32 to vector<8x128xf32>
      %95 = arith.mulf %94, %76 : vector<8x128xf32>
      %cst_36 = arith.constant 0.0785935446 : f32
      %96 = vector.broadcast %cst_36 : f32 to vector<8x128xf32>
      %97 = arith.addf %95, %96 : vector<8x128xf32>
      %cst_37 = arith.constant 5.500000e-02 : f32
      %98 = vector.broadcast %cst_37 : f32 to vector<8x128xf32>
      %99 = arith.subf %97, %98 : vector<8x128xf32>
      %cst_38 = arith.constant 1.100000e-01 : f32
      %100 = vector.broadcast %cst_38 : f32 to vector<8x128xf32>
      %101 = arith.cmpf olt, %76, %100 : vector<8x128xf32>
      %102 = arith.select %101, %93, %99 : vector<8x128xi1>, vector<8x128xf32>
      %103 = arith.subf %42, %66 : vector<8x128xf32>
      %104 = math.absf %103 : vector<8x128xf32>
      %cst_39 = arith.constant 19.085537 : f32
      %105 = vector.broadcast %cst_39 : f32 to vector<8x128xf32>
      %106 = arith.mulf %105, %104 : vector<8x128xf32>
      %cst_40 = arith.constant 1.000000e+00 : f32
      %107 = vector.broadcast %cst_40 : f32 to vector<8x128xf32>
      %108 = arith.addf %106, %107 : vector<8x128xf32>
      %cst_41 = arith.constant 0.0261978488 : f32
      %109 = vector.broadcast %cst_41 : f32 to vector<8x128xf32>
      %110 = arith.mulf %109, %108 : vector<8x128xf32>
      %cst_42 = arith.constant 19.085537 : f32
      %111 = vector.broadcast %cst_42 : f32 to vector<8x128xf32>
      %112 = arith.mulf %111, %104 : vector<8x128xf32>
      %cst_43 = arith.constant 1.100000e-01 : f32
      %113 = vector.broadcast %cst_43 : f32 to vector<8x128xf32>
      %114 = arith.divf %112, %113 : vector<8x128xf32>
      %cst_44 = arith.constant 1.000000e+00 : f32
      %115 = vector.broadcast %cst_44 : f32 to vector<8x128xf32>
      %116 = arith.addf %114, %115 : vector<8x128xf32>
      %117 = math.log %116 : vector<8x128xf32>
      %118 = arith.mulf %110, %117 : vector<8x128xf32>
      %cst_45 = arith.constant 5.000000e-01 : f32
      %119 = vector.broadcast %cst_45 : f32 to vector<8x128xf32>
      %120 = arith.mulf %119, %104 : vector<8x128xf32>
      %121 = arith.subf %118, %120 : vector<8x128xf32>
      %cst_46 = arith.constant 1.500000e+00 : f32
      %122 = vector.broadcast %cst_46 : f32 to vector<8x128xf32>
      %123 = arith.mulf %122, %104 : vector<8x128xf32>
      %cst_47 = arith.constant 0.0785935446 : f32
      %124 = vector.broadcast %cst_47 : f32 to vector<8x128xf32>
      %125 = arith.addf %123, %124 : vector<8x128xf32>
      %cst_48 = arith.constant 5.500000e-02 : f32
      %126 = vector.broadcast %cst_48 : f32 to vector<8x128xf32>
      %127 = arith.subf %125, %126 : vector<8x128xf32>
      %cst_49 = arith.constant 1.100000e-01 : f32
      %128 = vector.broadcast %cst_49 : f32 to vector<8x128xf32>
      %129 = arith.cmpf olt, %104, %128 : vector<8x128xf32>
      %130 = arith.select %129, %121, %127 : vector<8x128xi1>, vector<8x128xf32>
      %131 = arith.addf %102, %130 : vector<8x128xf32>
      %132 = arith.subf %44, %70 : vector<8x128xf32>
      %133 = math.absf %132 : vector<8x128xf32>
      %cst_50 = arith.constant 19.085537 : f32
      %134 = vector.broadcast %cst_50 : f32 to vector<8x128xf32>
      %135 = arith.mulf %134, %133 : vector<8x128xf32>
      %cst_51 = arith.constant 1.000000e+00 : f32
      %136 = vector.broadcast %cst_51 : f32 to vector<8x128xf32>
      %137 = arith.addf %135, %136 : vector<8x128xf32>
      %cst_52 = arith.constant 0.0261978488 : f32
      %138 = vector.broadcast %cst_52 : f32 to vector<8x128xf32>
      %139 = arith.mulf %138, %137 : vector<8x128xf32>
      %cst_53 = arith.constant 19.085537 : f32
      %140 = vector.broadcast %cst_53 : f32 to vector<8x128xf32>
      %141 = arith.mulf %140, %133 : vector<8x128xf32>
      %cst_54 = arith.constant 1.100000e-01 : f32
      %142 = vector.broadcast %cst_54 : f32 to vector<8x128xf32>
      %143 = arith.divf %141, %142 : vector<8x128xf32>
      %cst_55 = arith.constant 1.000000e+00 : f32
      %144 = vector.broadcast %cst_55 : f32 to vector<8x128xf32>
      %145 = arith.addf %143, %144 : vector<8x128xf32>
      %146 = math.log %145 : vector<8x128xf32>
      %147 = arith.mulf %139, %146 : vector<8x128xf32>
      %cst_56 = arith.constant 5.000000e-01 : f32
      %148 = vector.broadcast %cst_56 : f32 to vector<8x128xf32>
      %149 = arith.mulf %148, %133 : vector<8x128xf32>
      %150 = arith.subf %147, %149 : vector<8x128xf32>
      %cst_57 = arith.constant 1.500000e+00 : f32
      %151 = vector.broadcast %cst_57 : f32 to vector<8x128xf32>
      %152 = arith.mulf %151, %133 : vector<8x128xf32>
      %cst_58 = arith.constant 0.0785935446 : f32
      %153 = vector.broadcast %cst_58 : f32 to vector<8x128xf32>
      %154 = arith.addf %152, %153 : vector<8x128xf32>
      %cst_59 = arith.constant 5.500000e-02 : f32
      %155 = vector.broadcast %cst_59 : f32 to vector<8x128xf32>
      %156 = arith.subf %154, %155 : vector<8x128xf32>
      %cst_60 = arith.constant 1.100000e-01 : f32
      %157 = vector.broadcast %cst_60 : f32 to vector<8x128xf32>
      %158 = arith.cmpf olt, %133, %157 : vector<8x128xf32>
      %159 = arith.select %158, %150, %156 : vector<8x128xi1>, vector<8x128xf32>
      %160 = arith.addf %131, %159 : vector<8x128xf32>
      %161 = arith.subf %46, %74 : vector<8x128xf32>
      %162 = math.absf %161 : vector<8x128xf32>
      %cst_61 = arith.constant 19.085537 : f32
      %163 = vector.broadcast %cst_61 : f32 to vector<8x128xf32>
      %164 = arith.mulf %163, %162 : vector<8x128xf32>
      %cst_62 = arith.constant 1.000000e+00 : f32
      %165 = vector.broadcast %cst_62 : f32 to vector<8x128xf32>
      %166 = arith.addf %164, %165 : vector<8x128xf32>
      %cst_63 = arith.constant 0.0261978488 : f32
      %167 = vector.broadcast %cst_63 : f32 to vector<8x128xf32>
      %168 = arith.mulf %167, %166 : vector<8x128xf32>
      %cst_64 = arith.constant 19.085537 : f32
      %169 = vector.broadcast %cst_64 : f32 to vector<8x128xf32>
      %170 = arith.mulf %169, %162 : vector<8x128xf32>
      %cst_65 = arith.constant 1.100000e-01 : f32
      %171 = vector.broadcast %cst_65 : f32 to vector<8x128xf32>
      %172 = arith.divf %170, %171 : vector<8x128xf32>
      %cst_66 = arith.constant 1.000000e+00 : f32
      %173 = vector.broadcast %cst_66 : f32 to vector<8x128xf32>
      %174 = arith.addf %172, %173 : vector<8x128xf32>
      %175 = math.log %174 : vector<8x128xf32>
      %176 = arith.mulf %168, %175 : vector<8x128xf32>
      %cst_67 = arith.constant 5.000000e-01 : f32
      %177 = vector.broadcast %cst_67 : f32 to vector<8x128xf32>
      %178 = arith.mulf %177, %162 : vector<8x128xf32>
      %179 = arith.subf %176, %178 : vector<8x128xf32>
      %cst_68 = arith.constant 1.500000e+00 : f32
      %180 = vector.broadcast %cst_68 : f32 to vector<8x128xf32>
      %181 = arith.mulf %180, %162 : vector<8x128xf32>
      %cst_69 = arith.constant 0.0785935446 : f32
      %182 = vector.broadcast %cst_69 : f32 to vector<8x128xf32>
      %183 = arith.addf %181, %182 : vector<8x128xf32>
      %cst_70 = arith.constant 5.500000e-02 : f32
      %184 = vector.broadcast %cst_70 : f32 to vector<8x128xf32>
      %185 = arith.subf %183, %184 : vector<8x128xf32>
      %cst_71 = arith.constant 1.100000e-01 : f32
      %186 = vector.broadcast %cst_71 : f32 to vector<8x128xf32>
      %187 = arith.cmpf olt, %162, %186 : vector<8x128xf32>
      %188 = arith.select %187, %179, %185 : vector<8x128xi1>, vector<8x128xf32>
      %189 = arith.addf %160, %188 : vector<8x128xf32>
      %190 = arith.mulf %189, %18 : vector<8x128xf32>
      %191 = vector.shape_cast %190 : vector<8x128xf32> to vector<1x8x128xf32>
      %cst_72 = arith.constant dense<0.000000e+00> : vector<1xf32>
      %192 = vector.multi_reduction <add>, %191, %cst_72 [1, 2] : vector<1x8x128xf32> to vector<1xf32>
      %193 = vector.shape_cast %192 : vector<1xf32> to vector<1x1x1xf32>
      %194 = vector.extract %193[0, 0, 0] : f32 from vector<1x1x1xf32>
      %cst_73 = arith.constant 1.000000e-01 : f32
      %195 = vector.broadcast %cst_73 : f32 to vector<8x128xf32>
      %196 = arith.mulf %40, %195 : vector<8x128xf32>
      %197 = arith.mulf %196, %26 : vector<8x128xf32>
      %198 = arith.addf %20, %197 : vector<8x128xf32>
      %cst_74 = arith.constant 1.000000e-01 : f32
      %199 = vector.broadcast %cst_74 : f32 to vector<8x128xf32>
      %200 = arith.mulf %42, %199 : vector<8x128xf32>
      %201 = arith.mulf %200, %30 : vector<8x128xf32>
      %202 = arith.addf %22, %201 : vector<8x128xf32>
      %cst_75 = arith.constant 2.000000e-01 : f32
      %203 = vector.broadcast %cst_75 : f32 to vector<8x128xf32>
      %204 = arith.mulf %44, %203 : vector<8x128xf32>
      %205 = math.exp %204 : vector<8x128xf32>
      %206 = arith.mulf %26, %205 : vector<8x128xf32>
      %cst_76 = arith.constant 2.000000e-01 : f32
      %207 = vector.broadcast %cst_76 : f32 to vector<8x128xf32>
      %208 = arith.mulf %46, %207 : vector<8x128xf32>
      %209 = math.exp %208 : vector<8x128xf32>
      %210 = arith.mulf %30, %209 : vector<8x128xf32>
      %cst_77 = arith.constant 5.000000e-01 : f32
      %211 = vector.broadcast %cst_77 : f32 to vector<8x128xf32>
      %212 = arith.mulf %206, %211 : vector<8x128xf32>
      %213 = arith.subf %198, %212 : vector<8x128xf32>
      %cst_78 = arith.constant 5.000000e-01 : f32
      %214 = vector.broadcast %cst_78 : f32 to vector<8x128xf32>
      %215 = arith.mulf %210, %214 : vector<8x128xf32>
      %216 = arith.subf %202, %215 : vector<8x128xf32>
      %217 = arith.addf %213, %206 : vector<8x128xf32>
      %218 = arith.addf %216, %210 : vector<8x128xf32>
      %219 = arith.minimumf %217, %36 : vector<8x128xf32>
      %220 = arith.maximumf %213, %32 : vector<8x128xf32>
      %221 = arith.subf %219, %220 : vector<8x128xf32>
      %cst_79 = arith.constant 0.000000e+00 : f32
      %222 = vector.broadcast %cst_79 : f32 to vector<8x128xf32>
      %223 = arith.maximumf %221, %222 : vector<8x128xf32>
      %224 = arith.minimumf %218, %38 : vector<8x128xf32>
      %225 = arith.maximumf %216, %34 : vector<8x128xf32>
      %226 = arith.subf %224, %225 : vector<8x128xf32>
      %cst_80 = arith.constant 0.000000e+00 : f32
      %227 = vector.broadcast %cst_80 : f32 to vector<8x128xf32>
      %228 = arith.maximumf %226, %227 : vector<8x128xf32>
      %229 = arith.mulf %223, %228 : vector<8x128xf32>
      %230 = arith.subf %36, %32 : vector<8x128xf32>
      %231 = arith.subf %38, %34 : vector<8x128xf32>
      %232 = arith.mulf %206, %210 : vector<8x128xf32>
      %233 = arith.mulf %230, %231 : vector<8x128xf32>
      %234 = arith.addf %232, %233 : vector<8x128xf32>
      %235 = arith.subf %234, %229 : vector<8x128xf32>
      %cst_81 = arith.constant 1.000000e-07 : f32
      %236 = vector.broadcast %cst_81 : f32 to vector<8x128xf32>
      %237 = arith.addf %235, %236 : vector<8x128xf32>
      %238 = tpu.reciprocal %237 {approx = true} : vector<8x128xf32> -> vector<8x128xf32>
      %239 = arith.mulf %229, %238 : vector<8x128xf32>
      %240 = arith.addf %32, %36 : vector<8x128xf32>
      %cst_82 = arith.constant 5.000000e-01 : f32
      %241 = vector.broadcast %cst_82 : f32 to vector<8x128xf32>
      %242 = arith.mulf %240, %241 : vector<8x128xf32>
      %243 = arith.subf %242, %198 : vector<8x128xf32>
      %244 = arith.addf %34, %38 : vector<8x128xf32>
      %cst_83 = arith.constant 5.000000e-01 : f32
      %245 = vector.broadcast %cst_83 : f32 to vector<8x128xf32>
      %246 = arith.mulf %244, %245 : vector<8x128xf32>
      %247 = arith.subf %246, %202 : vector<8x128xf32>
      %248 = arith.mulf %243, %243 : vector<8x128xf32>
      %249 = arith.mulf %247, %247 : vector<8x128xf32>
      %250 = arith.addf %248, %249 : vector<8x128xf32>
      %251 = math.sqrt %250 : vector<8x128xf32>
      %cst_84 = arith.constant 1.000000e-07 : f32
      %252 = vector.broadcast %cst_84 : f32 to vector<8x128xf32>
      %253 = arith.addf %251, %252 : vector<8x128xf32>
      %254 = tpu.reciprocal %253 {approx = true} : vector<8x128xf32> -> vector<8x128xf32>
      %255 = math.absf %247 : vector<8x128xf32>
      %256 = arith.mulf %255, %254 : vector<8x128xf32>
      %257 = math.absf %243 : vector<8x128xf32>
      %258 = arith.mulf %257, %254 : vector<8x128xf32>
      %cst_85 = arith.constant 0.707106769 : f32
      %259 = vector.broadcast %cst_85 : f32 to vector<8x128xf32>
      %260 = arith.cmpf ogt, %256, %259 : vector<8x128xf32>
      %261 = arith.select %260, %258, %256 : vector<8x128xi1>, vector<8x128xf32>
      %cst_86 = arith.constant 2.000000e+00 : f32
      %262 = vector.broadcast %cst_86 : f32 to vector<8x128xf32>
      %263 = arith.mulf %262, %261 : vector<8x128xf32>
      %264 = arith.mulf %261, %261 : vector<8x128xf32>
      %cst_87 = arith.constant 1.000000e+00 : f32
      %265 = vector.broadcast %cst_87 : f32 to vector<8x128xf32>
      %266 = arith.subf %265, %264 : vector<8x128xf32>
      %cst_88 = arith.constant 0.000000e+00 : f32
      %267 = vector.broadcast %cst_88 : f32 to vector<8x128xf32>
      %268 = arith.maximumf %266, %267 : vector<8x128xf32>
      %269 = math.sqrt %268 : vector<8x128xf32>
      %270 = arith.mulf %263, %269 : vector<8x128xf32>
      %271 = arith.maximumf %217, %36 : vector<8x128xf32>
      %272 = arith.minimumf %213, %32 : vector<8x128xf32>
      %273 = arith.subf %271, %272 : vector<8x128xf32>
      %cst_89 = arith.constant 1.000000e-07 : f32
      %274 = vector.broadcast %cst_89 : f32 to vector<8x128xf32>
      %275 = arith.addf %273, %274 : vector<8x128xf32>
      %276 = arith.maximumf %218, %38 : vector<8x128xf32>
      %277 = arith.minimumf %216, %34 : vector<8x128xf32>
      %278 = arith.subf %276, %277 : vector<8x128xf32>
      %cst_90 = arith.constant 1.000000e-07 : f32
      %279 = vector.broadcast %cst_90 : f32 to vector<8x128xf32>
      %280 = arith.addf %278, %279 : vector<8x128xf32>
      %281 = tpu.reciprocal %275 {approx = true} : vector<8x128xf32> -> vector<8x128xf32>
      %282 = arith.mulf %243, %281 : vector<8x128xf32>
      %283 = tpu.reciprocal %280 {approx = true} : vector<8x128xf32> -> vector<8x128xf32>
      %284 = arith.mulf %247, %283 : vector<8x128xf32>
      %cst_91 = arith.constant 2.000000e+00 : f32
      %285 = vector.broadcast %cst_91 : f32 to vector<8x128xf32>
      %286 = arith.subf %285, %270 : vector<8x128xf32>
      %cst_92 = arith.constant 0.000000e+00 : f32
      %287 = vector.broadcast %cst_92 : f32 to vector<8x128xf32>
      %288 = arith.subf %287, %286 : vector<8x128xf32>
      %289 = arith.mulf %288, %282 : vector<8x128xf32>
      %290 = arith.mulf %289, %282 : vector<8x128xf32>
      %291 = math.exp %290 : vector<8x128xf32>
      %cst_93 = arith.constant 2.000000e+00 : f32
      %292 = vector.broadcast %cst_93 : f32 to vector<8x128xf32>
      %293 = arith.subf %292, %291 : vector<8x128xf32>
      %cst_94 = arith.constant 0.000000e+00 : f32
      %294 = vector.broadcast %cst_94 : f32 to vector<8x128xf32>
      %295 = arith.subf %294, %286 : vector<8x128xf32>
      %296 = arith.mulf %295, %284 : vector<8x128xf32>
      %297 = arith.mulf %296, %284 : vector<8x128xf32>
      %298 = math.exp %297 : vector<8x128xf32>
      %299 = arith.subf %293, %298 : vector<8x128xf32>
      %300 = arith.subf %206, %230 : vector<8x128xf32>
      %301 = math.absf %300 : vector<8x128xf32>
      %302 = arith.maximumf %206, %230 : vector<8x128xf32>
      %cst_95 = arith.constant 1.000000e-07 : f32
      %303 = vector.broadcast %cst_95 : f32 to vector<8x128xf32>
      %304 = arith.addf %302, %303 : vector<8x128xf32>
      %305 = tpu.reciprocal %304 {approx = true} : vector<8x128xf32> -> vector<8x128xf32>
      %306 = arith.mulf %301, %305 : vector<8x128xf32>
      %307 = arith.subf %210, %231 : vector<8x128xf32>
      %308 = math.absf %307 : vector<8x128xf32>
      %309 = arith.maximumf %210, %231 : vector<8x128xf32>
      %cst_96 = arith.constant 1.000000e-07 : f32
      %310 = vector.broadcast %cst_96 : f32 to vector<8x128xf32>
      %311 = arith.addf %309, %310 : vector<8x128xf32>
      %312 = tpu.reciprocal %311 {approx = true} : vector<8x128xf32> -> vector<8x128xf32>
      %313 = arith.mulf %308, %312 : vector<8x128xf32>
      %cst_97 = arith.constant 0.000000e+00 : f32
      %314 = vector.broadcast %cst_97 : f32 to vector<8x128xf32>
      %315 = arith.subf %314, %306 : vector<8x128xf32>
      %316 = math.exp %315 : vector<8x128xf32>
      %cst_98 = arith.constant 1.000000e+00 : f32
      %317 = vector.broadcast %cst_98 : f32 to vector<8x128xf32>
      %318 = arith.subf %317, %316 : vector<8x128xf32>
      %cst_99 = arith.constant 0.000000e+00 : f32
      %319 = vector.broadcast %cst_99 : f32 to vector<8x128xf32>
      %320 = arith.subf %319, %313 : vector<8x128xf32>
      %321 = math.exp %320 : vector<8x128xf32>
      %cst_100 = arith.constant 1.000000e+00 : f32
      %322 = vector.broadcast %cst_100 : f32 to vector<8x128xf32>
      %323 = arith.subf %322, %321 : vector<8x128xf32>
      %324 = arith.mulf %318, %318 : vector<8x128xf32>
      %325 = arith.mulf %323, %323 : vector<8x128xf32>
      %326 = arith.mulf %324, %324 : vector<8x128xf32>
      %327 = arith.mulf %325, %325 : vector<8x128xf32>
      %328 = arith.addf %326, %327 : vector<8x128xf32>
      %329 = arith.addf %299, %328 : vector<8x128xf32>
      %cst_101 = arith.constant 5.000000e-01 : f32
      %330 = vector.broadcast %cst_101 : f32 to vector<8x128xf32>
      %331 = arith.mulf %330, %329 : vector<8x128xf32>
      %332 = arith.subf %239, %331 : vector<8x128xf32>
      %cst_102 = arith.constant 1.000000e+00 : f32
      %333 = vector.broadcast %cst_102 : f32 to vector<8x128xf32>
      %334 = arith.subf %333, %332 : vector<8x128xf32>
      %cst_103 = arith.constant 4.000000e+00 : f32
      %335 = vector.broadcast %cst_103 : f32 to vector<8x128xf32>
      %336 = arith.mulf %335, %18 : vector<8x128xf32>
      %337 = arith.mulf %334, %336 : vector<8x128xf32>
      %338 = vector.shape_cast %337 : vector<8x128xf32> to vector<1x8x128xf32>
      %cst_104 = arith.constant dense<0.000000e+00> : vector<1xf32>
      %339 = vector.multi_reduction <add>, %338, %cst_104 [1, 2] : vector<1x8x128xf32> to vector<1xf32>
      %340 = vector.shape_cast %339 : vector<1xf32> to vector<1x1x1xf32>
      %341 = vector.extract %340[0, 0, 0] : f32 from vector<1x1x1xf32>
      %c0_105 = arith.constant 0 : index
      %342 = memref.load %arg8[%c0_105] : memref<1xf32, #tpu.memory_space<smem>>
      %343 = arith.addf %194, %341 : f32
      %344 = arith.addf %342, %343 : f32
      %c0_106 = arith.constant 0 : index
      %345 = memref.load %arg8[%c0_106] : memref<1xf32, #tpu.memory_space<smem>>
      memref.store %344, %arg8[%c0_106] : memref<1xf32, #tpu.memory_space<smem>>
    } else {
    }
    %c0_i32_3 = arith.constant 0 : i32
    %9 = arith.cmpi eq, %arg1, %c0_i32_3 : i32
    %10 = arith.extui %9 : i1 to i32
    %c0_i32_4 = arith.constant 0 : i32
    %11 = arith.cmpi ne, %10, %c0_i32_4 : i32
    scf.if %11 {
      %12 = tpu.iota {dimensions = array<i32: 1>} : vector<1x8x128xi32>
      %13 = tpu.iota {dimensions = array<i32: 2>} : vector<1x8x128xi32>
      %c0_i32_5 = arith.constant 0 : i32
      %14 = vector.broadcast %c0_i32_5 : i32 to vector<1x8x128xi32>
      %15 = arith.cmpi eq, %12, %14 : vector<1x8x128xi32>
      %c0_i32_6 = arith.constant 0 : i32
      %16 = vector.broadcast %c0_i32_6 : i32 to vector<1x8x128xi32>
      %17 = arith.cmpi eq, %13, %16 : vector<1x8x128xi32>
      %18 = arith.andi %15, %17 : vector<1x8x128xi1>
      %c0 = arith.constant 0 : index
      %19 = memref.load %arg8[%c0] : memref<1xf32, #tpu.memory_space<smem>>
      %cst = arith.constant 0.000000e+00 : f32
      %20 = vector.broadcast %19 : f32 to vector<1x8x128xf32>
      %21 = vector.broadcast %cst : f32 to vector<1x8x128xf32>
      %22 = arith.select %18, %20, %21 : vector<1x8x128xi1>, vector<1x8x128xf32>
      %c0_7 = arith.constant 0 : index
      %c0_8 = arith.constant 0 : index
      %c0_9 = arith.constant 0 : index
      %23 = vector.load %arg7[%c0_7, %c0_8, %c0_9] : memref<1x8x128xf32, #tpu.memory_space<vmem>>, vector<1x8x128xf32>
      tpu.vector_store %arg7[%c0_7, %c0_8, %c0_9], %22 {strides = array<i32>} : memref<1x8x128xf32, #tpu.memory_space<vmem>>, vector<1x8x128xf32>,
    } else {
    }
    return
  }
  func.func @transform_0(%arg0: i32, %arg1: i32, %arg2: memref<2x1xi32, #tpu.memory_space<smem>>) -> (i32, i32, i32, i32) {
    %c0_i32 = arith.constant 0 : i32
    %c0_i32_0 = arith.constant 0 : i32
    %c0_i32_1 = arith.constant 0 : i32
    return %arg0, %c0_i32, %arg1, %c0_i32_0 : i32, i32, i32, i32
  }
  func.func @transform_1(%arg0: i32, %arg1: i32, %arg2: memref<2x1xi32, #tpu.memory_space<smem>>) -> (i32, i32, i32, i32) {
    %c0_i32 = arith.constant 0 : i32
    %c0_i32_0 = arith.constant 0 : i32
    %c0_i32_1 = arith.constant 0 : i32
    return %arg0, %c0_i32, %arg1, %c0_i32_0 : i32, i32, i32, i32
  }
  func.func @transform_2(%arg0: i32, %arg1: i32, %arg2: memref<2x1xi32, #tpu.memory_space<smem>>) -> (i32, i32, i32) {
    %c0_i32 = arith.constant 0 : i32
    %c0_i32_0 = arith.constant 0 : i32
    %c0_i32_1 = arith.constant 0 : i32
    return %c0_i32, %arg1, %c0_i32_0 : i32, i32, i32
  }
  func.func @transform_3(%arg0: i32, %arg1: i32, %arg2: memref<2x1xi32, #tpu.memory_space<smem>>) -> (i32, i32, i32, i32) {
    %c0_i32 = arith.constant 0 : i32
    %c0_i32_0 = arith.constant 0 : i32
    %c0_i32_1 = arith.constant 0 : i32
    return %arg0, %c0_i32, %arg1, %c0_i32_0 : i32, i32, i32, i32
  }
  func.func @transform_4(%arg0: i32, %arg1: i32, %arg2: memref<2x1xi32, #tpu.memory_space<smem>>) -> (i32, i32, i32) {
    %c0_i32 = arith.constant 0 : i32
    %c0_i32_0 = arith.constant 0 : i32
    %c0_i32_1 = arith.constant 0 : i32
    return %arg0, %c0_i32, %c0_i32_0 : i32, i32, i32
  }
}

</mosaic_0001>

<llo_original>
// kernel: multibox_loss.3
$region0: #{multibox_loss.3}
  #allocation0 [shape = 'u32[]', space=smem, size = 0x4, offset = 0x4, fixed_abs, tag = 'smem constant byte address 0x4 - core index']
  #allocation1 [shape = 'u32[144,128]{1,0:T(1,128)}', space=vmem, size = 0x12000, scoped, tag = 'internal scratch']
  %s0 = inlined_call_operand.vmem [shape: f32[2,16,4], index: 0, kind: input, shape index: {}]
  %s1 = inlined_call_operand.vmem [shape: f32[2,4,128], index: 1, kind: input, shape index: {}]
  %s2 = inlined_call_operand.vmem [shape: f32[4,128], index: 2, kind: input, shape index: {}]
  %s3 = inlined_call_operand.vmem [shape: bf16[2,16,128], index: 3, kind: input, shape index: {}]
  %s4 = inlined_call_operand.vmem [shape: bf16[2,16,128], index: 4, kind: output, shape index: {0}]
  %s5 = inlined_call_operand.vmem [shape: bf16[2,16,128], index: 5, kind: output, shape index: {1}]
  %6 = xla_tuple %s4, %s5
  %s7 = sld [smem:[#allocation0]]
  $region57: #{multibox_loss.3} parent=0
    _
  %s9 = ssub.s32 1, %s7
  %s10 = scalar_select 0, %s9, %s7
  loop: start=0, step=1, limit=4
  $region2: #{multibox_loss.3} parent=0 // loop_pre_header
    _
  $region3: #{multibox_loss.3} parent=0 // loop_header
    %s12 = sphi 0, %s16
    %p13 = scmp.ge.s32.totalorder %s12, 4
    %s19 = sphi 0, %s31
    %s20 = sphi 0, %s27
    %s21 = sphi 0, %s19
    %s22 = sphi 0, %s20
    %s23 = sphi 0, %s21
    %s24 = sphi 0, %s22
    %s34 = sphi 0, %s36
    %s37 = sphi 0, %s34
    %s38 = sphi 0, %s37
    %s54 = sphi 0, %s38
    %s62 = sphi 0, %s64
    %s65 = sphi 0, %s62
    %s66 = sphi 0, %s65
    %s82 = sphi 0, %s66
    %s88 = sphi 0, %s90
    %s91 = sphi 0, %s88
    %s92 = sphi 0, %s91
    %s108 = sphi 0, %s92
    %s116 = sphi 0, %s118
    %s119 = sphi 0, %s116
    %s120 = sphi 0, %s119
    %s136 = sphi 0, %s120
    %s144 = sphi 0, %s146
    %s147 = sphi 0, %s144
    %s148 = sphi 0, %s147
    %s164 = sphi 0, %s148
    %s172 = sphi 0, %s174
    %s175 = sphi 0, %s172
    %s176 = sphi 0, %s175
    %s192 = sphi 0, %s176
  $region4: #{multibox_loss.3} parent=0 // loop_header_branch
    %15 = sbr.rel (%p13) target = $region8
  $region5: #{multibox_loss.3} parent=0 // loop_body
    %s17 = ssub.s32 %s12, 1
    %s18 = ssub.s32 %s12, 2
    %s25 = sadd.s32 1, %s20
    %p26 = scmp.ge.s32.totalorder %s25, 1
    %s27 = scalar_select %p26, 0, %s25
    %s28 = sadd.s32 1, %s19
    %s29 = scalar_select %p26, %s28, %s19
    %p30 = scmp.ge.s32.totalorder %s29, 2
    %s31 = scalar_select %p30, 0, %s29
    %s32 = ssub.s32 %s19, %s31
    %p33 = scmp.eq.s32.totalorder %s32, 0
    %s35 = sadd.s32 %s34, 1
    %s36 = scalar_select %p33, %s34, %s35
    %p39 = pneg %p33
    %p40 = scmp.eq.s32.totalorder %s12, 1
    %p41 = por %p39, %p40
    %p42 = scmp.ne.s32.totalorder %s34, %s37
    %p43 = scmp.eq.s32.totalorder %s12, 0
    %p44 = por %p42, %p43
    %p45 = scmp.ne.s32.totalorder %s34, %s37
    %p46 = scmp.eq.s32.totalorder %s17, 1
    %p47 = por %p45, %p46
    %p48 = scmp.ne.s32.totalorder %s37, %s38
    %p49 = scmp.eq.s32.totalorder %s17, 0
    %p50 = por %p48, %p49
    %p51 = scmp.ne.s32.totalorder %s37, %s38
    %p52 = scmp.eq.s32.totalorder %s18, 1
    %p53 = por %p51, %p52
    %p55 = scmp.ne.s32.totalorder %s38, %s54
    %p56 = scmp.eq.s32.totalorder %s18, 0
    %p57 = por %p55, %p56
    %s58 = ssub.s32 %s19, %s31
    %s59 = ssub.s32 %s20, %s27
    %s60 = sor.u32 %s58, %s59
    %p61 = scmp.eq.s32.totalorder %s60, 0
    %s63 = sadd.s32 %s62, 1
    %s64 = scalar_select %p61, %s62, %s63
    %p67 = pneg %p61
    %p68 = scmp.eq.s32.totalorder %s12, 1
    %p69 = por %p67, %p68
    %p70 = scmp.ne.s32.totalorder %s62, %s65
    %p71 = scmp.eq.s32.totalorder %s12, 0
    %p72 = por %p70, %p71
    %p73 = scmp.ne.s32.totalorder %s62, %s65
    %p74 = scmp.eq.s32.totalorder %s17, 1
    %p75 = por %p73, %p74
    %p76 = scmp.ne.s32.totalorder %s65, %s66
    %p77 = scmp.eq.s32.totalorder %s17, 0
    %p78 = por %p76, %p77
    %p79 = scmp.ne.s32.totalorder %s65, %s66
    %p80 = scmp.eq.s32.totalorder %s18, 1
    %p81 = por %p79, %p80
    %p83 = scmp.ne.s32.totalorder %s66, %s82
    %p84 = scmp.eq.s32.totalorder %s18, 0
    %p85 = por %p83, %p84
    %s86 = ssub.s32 %s20, %s27
    %p87 = scmp.eq.s32.totalorder %s86, 0
    %s89 = sadd.s32 %s88, 1
    %s90 = scalar_select %p87, %s88, %s89
    %p93 = pneg %p87
    %p94 = scmp.eq.s32.totalorder %s12, 1
    %p95 = por %p93, %p94
    %p96 = scmp.ne.s32.totalorder %s88, %s91
    %p97 = scmp.eq.s32.totalorder %s12, 0
    %p98 = por %p96, %p97
    %p99 = scmp.ne.s32.totalorder %s88, %s91
    %p100 = scmp.eq.s32.totalorder %s17, 1
    %p101 = por %p99, %p100
    %p102 = scmp.ne.s32.totalorder %s91, %s92
    %p103 = scmp.eq.s32.totalorder %s17, 0
    %p104 = por %p102, %p103
    %p105 = scmp.ne.s32.totalorder %s91, %s92
    %p106 = scmp.eq.s32.totalorder %s18, 1
    %p107 = por %p105, %p106
    %p109 = scmp.ne.s32.totalorder %s92, %s108
    %p110 = scmp.eq.s32.totalorder %s18, 0
    %p111 = por %p109, %p110
    %s112 = ssub.s32 %s19, %s31
    %s113 = ssub.s32 %s20, %s27
    %s114 = sor.u32 %s112, %s113
    %p115 = scmp.eq.s32.totalorder %s114, 0
    %s117 = sadd.s32 %s116, 1
    %s118 = scalar_select %p115, %s116, %s117
    %p121 = pneg %p115
    %p122 = scmp.eq.s32.totalorder %s12, 1
    %p123 = por %p121, %p122
    %p124 = scmp.ne.s32.totalorder %s116, %s119
    %p125 = scmp.eq.s32.totalorder %s12, 0
    %p126 = por %p124, %p125
    %p127 = scmp.ne.s32.totalorder %s116, %s119
    %p128 = scmp.eq.s32.totalorder %s17, 1
    %p129 = por %p127, %p128
    %p130 = scmp.ne.s32.totalorder %s119, %s120
    %p131 = scmp.eq.s32.totalorder %s17, 0
    %p132 = por %p130, %p131
    %p133 = scmp.ne.s32.totalorder %s119, %s120
    %p134 = scmp.eq.s32.totalorder %s18, 1
    %p135 = por %p133, %p134
    %p137 = scmp.ne.s32.totalorder %s120, %s136
    %p138 = scmp.eq.s32.totalorder %s18, 0
    %p139 = por %p137, %p138
    %s140 = ssub.s32 %s19, %s31
    %s141 = ssub.s32 %s20, %s27
    %s142 = sor.u32 %s140, %s141
    %p143 = scmp.eq.s32.totalorder %s142, 0
    %s145 = sadd.s32 %s144, 1
    %s146 = scalar_select %p143, %s144, %s145
    %p149 = pneg %p143
    %p150 = scmp.eq.s32.totalorder %s12, 1
    %p151 = por %p149, %p150
    %p152 = scmp.ne.s32.totalorder %s144, %s147
    %p153 = scmp.eq.s32.totalorder %s12, 0
    %p154 = por %p152, %p153
    %p155 = scmp.ne.s32.totalorder %s144, %s147
    %p156 = scmp.eq.s32.totalorder %s17, 1
    %p157 = por %p155, %p156
    %p158 = scmp.ne.s32.totalorder %s147, %s148
    %p159 = scmp.eq.s32.totalorder %s17, 0
    %p160 = por %p158, %p159
    %p161 = scmp.ne.s32.totalorder %s147, %s148
    %p162 = scmp.eq.s32.totalorder %s18, 1
    %p163 = por %p161, %p162
    %p165 = scmp.ne.s32.totalorder %s148, %s164
    %p166 = scmp.eq.s32.totalorder %s18, 0
    %p167 = por %p165, %p166
    %s168 = ssub.s32 %s19, %s31
    %s169 = ssub.s32 %s20, %s27
    %s170 = sor.u32 %s168, %s169
    %p171 = scmp.eq.s32.totalorder %s170, 0
    %s173 = sadd.s32 %s172, 1
    %s174 = scalar_select %p171, %s172, %s173
    %p177 = pneg %p171
    %p178 = scmp.eq.s32.totalorder %s12, 1
    %p179 = por %p177, %p178
    %p180 = scmp.ne.s32.totalorder %s172, %s175
    %p181 = scmp.eq.s32.totalorder %s12, 0
    %p182 = por %p180, %p181
    %p183 = scmp.ne.s32.totalorder %s172, %s175
    %p184 = scmp.eq.s32.totalorder %s17, 1
    %p185 = por %p183, %p184
    %p186 = scmp.ne.s32.totalorder %s175, %s176
    %p187 = scmp.eq.s32.totalorder %s17, 0
    %p188 = por %p186, %p187
    %p189 = scmp.ne.s32.totalorder %s175, %s176
    %p190 = scmp.eq.s32.totalorder %s18, 1
    %p191 = por %p189, %p190
    %p193 = scmp.ne.s32.totalorder %s176, %s192
    %p194 = scmp.eq.s32.totalorder %s18, 0
    %p195 = por %p193, %p194
    %p196 = scmp.le.s32.totalorder 1, %s12
    %p197 = scmp.lt.s32.totalorder %s12, 3
    %p198 = pnand %p196, %p197
    %p199 = pneg %p198
    // Predicated region
    $region9: #{multibox_loss.3} parent=5 // pred_check
      _
    $region10: #{multibox_loss.3} parent=5 // pred_check_branch
      %201 = sbr.rel (%p198) target = $region12
    $region11: #{multibox_loss.3} parent=5 // pred_region
      %s202 = ssub.s32 %s12, 1
      // Predicated region
      $region13: #{multibox_loss.3} parent=11 // pred_check
        %p203 = pneg %p104
      $region14: #{multibox_loss.3} parent=11 // pred_check_branch
        %205 = sbr.rel (%p203) target = $region16
      $region15: #{multibox_loss.3} parent=11 // pred_region
        %p206 = scmp.lt.s32.totalorder %s22, 0
        %s207 = scalar_select %p206, %s22, 0
        %s208 = smul.addr %s207, 4
        %s209 = scalar_lea.vmem %s2, %s208
      $region16: #{multibox_loss.3} parent=11 // pred_fallthru
        _
    $region12: #{multibox_loss.3} parent=5 // pred_fallthru
      _
    %p210 = scmp.lt.s32.totalorder %s12, 2
    // Predicated region
    $region17: #{multibox_loss.3} parent=5 // pred_check
      %p211 = pneg %p210
    $region18: #{multibox_loss.3} parent=5 // pred_check_branch
      %213 = sbr.rel (%p211) target = $region20
    $region19: #{multibox_loss.3} parent=5 // pred_region
      // Predicated region
      $region21: #{multibox_loss.3} parent=19 // pred_check
        %p214 = pneg %p44
      $region22: #{multibox_loss.3} parent=19 // pred_check_branch
        %216 = sbr.rel (%p214) target = $region24
      $region23: #{multibox_loss.3} parent=19 // pred_region
        %p217 = scmp.lt.s32.totalorder %s19, 1
        %s218 = scalar_select %p217, %s19, 1
        %s219 = smul.addr %s218, 2
        %s220 = smul.addr %s219, 8
        %s221 = scalar_lea.vmem %s0, %s220
      $region24: #{multibox_loss.3} parent=19 // pred_fallthru
        _
      // Predicated region
      $region25: #{multibox_loss.3} parent=19 // pred_check
        %p222 = pneg %p72
      $region26: #{multibox_loss.3} parent=19 // pred_check_branch
        %224 = sbr.rel (%p222) target = $region28
      $region27: #{multibox_loss.3} parent=19 // pred_region
        %p225 = scmp.lt.s32.totalorder %s19, 1
        %s226 = scalar_select %p225, %s19, 1
        %p227 = scmp.lt.s32.totalorder %s20, 0
        %s228 = scalar_select %p227, %s20, 0
        %s229 = sadd.s32 %s228, %s226
        %s230 = smul.addr %s229, 4
        %s231 = scalar_lea.vmem %s1, %s230
      $region28: #{multibox_loss.3} parent=19 // pred_fallthru
        _
      // Predicated region
      $region29: #{multibox_loss.3} parent=19 // pred_check
        %p232 = pneg %p126
      $region30: #{multibox_loss.3} parent=19 // pred_check_branch
        %234 = sbr.rel (%p232) target = $region32
      $region31: #{multibox_loss.3} parent=19 // pred_region
        %p235 = scmp.lt.s32.totalorder %s19, 1
        %s236 = scalar_select %p235, %s19, 1
        %p237 = scmp.lt.s32.totalorder %s20, 0
        %s238 = scalar_select %p237, %s20, 0
        %s239 = smul.addr %s236, 2
        %s240 = sadd.s32 %s238, %s239
        %s241 = smul.addr %s240, 4
        %s242 = scalar_lea.vmem %s3, %s241
      $region32: #{multibox_loss.3} parent=19 // pred_fallthru
        _
    $region20: #{multibox_loss.3} parent=5 // pred_fallthru
      _
    %p243 = scmp.le.s32.totalorder 1, %s12
    %p244 = scmp.lt.s32.totalorder %s12, 3
    %p245 = pnand %p243, %p244
    %p246 = pneg %p245
    // Predicated region
    $region33: #{multibox_loss.3} parent=5 // pred_check
      _
    $region34: #{multibox_loss.3} parent=5 // pred_check_branch
      %248 = sbr.rel (%p245) target = $region36
    $region35: #{multibox_loss.3} parent=5 // pred_region
      %s249 = ssub.s32 %s12, 1
      %p250 = scmp.lt.s32.totalorder %s21, 1
      %s251 = scalar_select %p250, %s21, 1
      %s252 = smul.addr %s251, 2
      %s253 = smul.addr %s252, 8
      %s254 = scalar_lea.vmem %s0, %s253
      %p255 = pneg %p50
      %p256 = pneg %p47
      %p257 = scmp.lt.s32.totalorder %s21, 1
      %s258 = scalar_select %p257, %s21, 1
      %p259 = scmp.lt.s32.totalorder %s22, 0
      %s260 = scalar_select %p259, %s22, 0
      %s261 = sadd.s32 %s260, %s258
      %s262 = smul.addr %s261, 4
      %s263 = scalar_lea.vmem %s1, %s262
      %p264 = pneg %p78
      %p265 = pneg %p75
      %p266 = scmp.lt.s32.totalorder %s22, 0
      %s267 = scalar_select %p266, %s22, 0
      %s268 = smul.addr %s267, 4
      %s269 = scalar_lea.vmem %s2, %s268
      %p270 = pneg %p104
      %p271 = pneg %p101
      %p272 = scmp.lt.s32.totalorder %s21, 1
      %s273 = scalar_select %p272, %s21, 1
      %p274 = scmp.lt.s32.totalorder %s22, 0
      %s275 = scalar_select %p274, %s22, 0
      %s276 = smul.addr %s273, 2
      %s277 = sadd.s32 %s275, %s276
      %s278 = smul.addr %s277, 4
      %s279 = scalar_lea.vmem %s3, %s278
      %p280 = pneg %p132
      %p281 = pneg %p129
      %p282 = pneg %p160
      %p283 = pneg %p157
      %p284 = scmp.lt.s32.totalorder %s21, 1
      %s285 = scalar_select %p284, %s21, 1
      %p286 = scmp.lt.s32.totalorder %s22, 0
      %s287 = scalar_select %p286, %s22, 0
      %s288 = smul.addr %s285, 2
      %s289 = sadd.s32 %s287, %s288
      %s290 = smul.addr %s289, 4
      %s291 = scalar_lea.vmem %s4, %s290
      %p292 = pneg %p188
      %p293 = pneg %p185
      %p294 = scmp.lt.s32.totalorder %s21, 1
      %s295 = scalar_select %p294, %s21, 1
      %p296 = scmp.lt.s32.totalorder %s22, 0
      %s297 = scalar_select %p296, %s22, 0
      %s298 = smul.addr %s295, 2
      %s299 = sadd.s32 %s297, %s298
      %s300 = smul.addr %s299, 4
      %s301 = scalar_lea.vmem %s5, %s300
      %p302 = scmp.lt.s32.totalorder %s21, 1
      %s303 = scalar_select %p302, %s21, 1
      %s304 = smul.addr %s303, 2
      %s305 = smul.addr %s304, 8
      %s306 = scalar_lea.vmem %s0, %s305
      %p307 = scmp.lt.s32.totalorder %s21, 1
      %s308 = scalar_select %p307, %s21, 1
      %p309 = scmp.lt.s32.totalorder %s22, 0
      %s310 = scalar_select %p309, %s22, 0
      %s311 = sadd.s32 %s310, %s308
      %s312 = smul.addr %s311, 4
      %s313 = scalar_lea.vmem %s1, %s312
      %p314 = scmp.lt.s32.totalorder %s22, 0
      %s315 = scalar_select %p314, %s22, 0
      %s316 = smul.addr %s315, 4
      %s317 = scalar_lea.vmem %s2, %s316
      %p318 = scmp.lt.s32.totalorder %s21, 1
      %s319 = scalar_select %p318, %s21, 1
      %p320 = scmp.lt.s32.totalorder %s22, 0
      %s321 = scalar_select %p320, %s22, 0
      %s322 = smul.addr %s319, 2
      %s323 = sadd.s32 %s321, %s322
      %s324 = smul.addr %s323, 4
      %s325 = scalar_lea.vmem %s3, %s324
      %p326 = scmp.lt.s32.totalorder %s21, 1
      %s327 = scalar_select %p326, %s21, 1
      %p328 = scmp.lt.s32.totalorder %s22, 0
      %s329 = scalar_select %p328, %s22, 0
      %s330 = smul.addr %s327, 2
      %s331 = sadd.s32 %s329, %s330
      %s332 = smul.addr %s331, 4
      %s333 = scalar_lea.vmem %s4, %s332
      %p334 = scmp.lt.s32.totalorder %s21, 1
      %s335 = scalar_select %p334, %s21, 1
      %p336 = scmp.lt.s32.totalorder %s22, 0
      %s337 = scalar_select %p336, %s22, 0
      %s338 = smul.addr %s335, 2
      %s339 = sadd.s32 %s337, %s338
      %s340 = smul.addr %s339, 4
      %s341 = scalar_lea.vmem %s5, %s340
      %v342 = vld [vmem:[%s306] sm:$0xff]
      %v343 = vld [vmem:[%s306 + $0x8] sm:$0xff]
      %v344 = vld [vmem:[%s317] sm:$0xf]
      %346 = vset.pattern.permute.xlu0 0
      %347 = vperm.xlu0 %346, %v342
      %v348 = vpop.permute.xlu0 %347
      %351 = vset.pattern.permute.xlu0 0
      %352 = vperm.xlu0 %351, %v343
      %v353 = vpop.permute.xlu0 %352
      %355 = vset.pattern.permute.xlu0 1
      %356 = vperm.xlu0 %355, %v342
      %v357 = vpop.permute.xlu0 %356
      %359 = vset.pattern.permute.xlu0 1
      %360 = vperm.xlu0 %359, %v343
      %v361 = vpop.permute.xlu0 %360
      %363 = vset.pattern.permute.xlu0 2
      %364 = vperm.xlu0 %363, %v342
      %v365 = vpop.permute.xlu0 %364
      %367 = vset.pattern.permute.xlu0 2
      %368 = vperm.xlu0 %367, %v343
      %v369 = vpop.permute.xlu0 %368
      %371 = vset.pattern.permute.xlu0 3
      %372 = vperm.xlu0 %371, %v342
      %v373 = vpop.permute.xlu0 %372
      %375 = vset.pattern.permute.xlu0 3
      %376 = vperm.xlu0 %375, %v343
      %v377 = vpop.permute.xlu0 %376
      %379 = vrot.lane.b32.xlu0 %v342, 2
      %v380 = vpop.permute.xlu0 %379
      %381 = vrot.lane.b32.xlu0 %v343, 2
      %v382 = vpop.permute.xlu0 %381
      %v385 = vsub.f32 %v342, %v380
      %v386 = vsub.f32 %v343, %v382
      %389 = vrot.lane.b32.xlu0 %v385, 127
      %v390 = vpop.permute.xlu0 %389
      %391 = vrot.lane.b32.xlu0 %v386, 127
      %v392 = vpop.permute.xlu0 %391
      %v395 = vmul.f32 %v385, %v390
      %v396 = vmul.f32 %v386, %v392
      %398 = vset.pattern.permute.xlu0 2
      %399 = vperm.xlu0 %398, %v395
      %v400 = vpop.permute.xlu0 %399
      %403 = vset.pattern.permute.xlu0 2
      %404 = vperm.xlu0 %403, %v396
      %v405 = vpop.permute.xlu0 %404
      %v407 = vld [vmem:[%s313] sm:$0xf]
      %v408 = vmul.f32 %v407, 0.1
      %v410 = vrot.slane %v344, 2
      %v412 = vmul.f32 %v408, %v410
      %v413 = vadd.f32 %v344, %v412
      %v414 = vmul.f32 %v407, 0.2
      %v415 = vmul.f32 %v414, 1.442695
      %v416 = vpow.pop %v415
      %v417 = vmul.f32 %v344, %v416
      %v418 = vmul.f32 %v417, 0.5
      %v420 = vrot.slane %v418, 2
      %v422 = vsub.f32 %v413, %v420
      %v424 = vrot.slane %v417, 2
      %v426 = vadd.f32 %v422, %v424
      %v427 = vrot.slane %v417, 1
      %v429 = vmul.f32 %v417, %v427
      %v430 = vlaneseq
      %v431 = vshrl.u32 %v430, 7
      %v432 = vsub.s32 0, %v431
      %v433 = vrot.slane %v426, %v432
      %v434 = vmin.f32 %v365, %v433
      %v435 = vmin.f32 %v369, %v433
      %v436 = vlaneseq
      %v437 = vshrl.u32 %v436, 7
      %v438 = vsub.s32 0, %v437
      %v439 = vrot.slane %v422, %v438
      %v440 = vmax.f32 %v348, %v439
      %v441 = vmax.f32 %v353, %v439
      %v442 = vsub.f32 %v434, %v440
      %v443 = vsub.f32 %v435, %v441
      %v444 = vmax.f32 %v442, 0.0
      %v445 = vmax.f32 %v443, 0.0
      %v446 = vlaneseq
      %v447 = vshrl.u32 %v446, 7
      %v448 = vsub.s32 1, %v447
      %v449 = vrot.slane %v426, %v448
      %v450 = vmin.f32 %v373, %v449
      %v451 = vmin.f32 %v377, %v449
      %v452 = vlaneseq
      %v453 = vshrl.u32 %v452, 7
      %v454 = vsub.s32 1, %v453
      %v455 = vrot.slane %v422, %v454
      %v456 = vmax.f32 %v357, %v455
      %v457 = vmax.f32 %v361, %v455
      %v458 = vsub.f32 %v450, %v456
      %v459 = vsub.f32 %v451, %v457
      %v460 = vmax.f32 %v458, 0.0
      %v461 = vmax.f32 %v459, 0.0
      %v462 = vmul.f32 %v444, %v460
      %v463 = vmul.f32 %v445, %v461
      %v464 = vlaneseq
      %v465 = vshrl.u32 %v464, 7
      %v466 = vsub.s32 2, %v465
      %v467 = vrot.slane %v429, %v466
      %v468 = vadd.f32 %v400, %v467
      %v469 = vadd.f32 %v405, %v467
      %v470 = vsub.f32 %v468, %v462
      %v471 = vsub.f32 %v469, %v463
      %v472 = vadd.f32 %v470, 1e-07
      %v473 = vadd.f32 %v471, 1e-07
      %v474 = vrcp.pop %v472
      %v475 = vrcp.pop %v473
      %v476 = vmul.f32 %v462, %v474
      %v477 = vmul.f32 %v463, %v475
      %v478 = vmax.f32 %v476, %v477
      %v479 = vrot.slane %v478, 4
      %v480 = vmax.f32 %v478, %v479
      %v481 = vrot.slane %v480, 2
      %v482 = vmax.f32 %v480, %v481
      %v483 = vrot.slane %v482, 1
      %v484 = vmax.f32 %v482, %v483
      %vm485 = vcmp.eq.f32.partialorder %v476, %v484
      %vm486 = vcmp.eq.f32.partialorder %v477, %v484
      %v487 = vsel %vm485, %v476, 0.0
      %v488 = vsel %vm486, %v477, 0.0
      %v489 = vpack.c.bf16 %v488, %v487
      %v491 = vunpack.c.l.b16 %v489
      %v492 = vunpack.c.h.b16 %v489
      %v493 = vpack.c.b16 %v491, %v491
      %v494 = vpack.c.b16 %v492, %v492
      %497 = vst [vmem:[%s333] sm:$0xf] %v493
      %498 = vst [vmem:[%s333 + $0x4] sm:$0xf] %v494
      %v499 = vmul.f32 %v344, 0.5
      %v501 = vrot.slane %v499, 2
      %v503 = vsub.f32 %v344, %v501
      %v504 = vadd.f32 %v503, %v410
      %v505 = vrot.slane %v344, 1
      %v507 = vmul.f32 %v344, %v505
      %v508 = vlaneseq
      %v509 = vshrl.u32 %v508, 7
      %v510 = vsub.s32 0, %v509
      %v511 = vrot.slane %v504, %v510
      %v512 = vmin.f32 %v365, %v511
      %v513 = vmin.f32 %v369, %v511
      %v514 = vlaneseq
      %v515 = vshrl.u32 %v514, 7
      %v516 = vsub.s32 0, %v515
      %v517 = vrot.slane %v503, %v516
      %v518 = vmax.f32 %v348, %v517
      %v519 = vmax.f32 %v353, %v517
      %v520 = vsub.f32 %v512, %v518
      %v521 = vsub.f32 %v513, %v519
      %v522 = vmax.f32 %v520, 0.0
      %v523 = vmax.f32 %v521, 0.0
      %v524 = vlaneseq
      %v525 = vshrl.u32 %v524, 7
      %v526 = vsub.s32 1, %v525
      %v527 = vrot.slane %v504, %v526
      %v528 = vmin.f32 %v373, %v527
      %v529 = vmin.f32 %v377, %v527
      %v530 = vlaneseq
      %v531 = vshrl.u32 %v530, 7
      %v532 = vsub.s32 1, %v531
      %v533 = vrot.slane %v503, %v532
      %v534 = vmax.f32 %v357, %v533
      %v535 = vmax.f32 %v361, %v533
      %v536 = vsub.f32 %v528, %v534
      %v537 = vsub.f32 %v529, %v535
      %v538 = vmax.f32 %v536, 0.0
      %v539 = vmax.f32 %v537, 0.0
      %v540 = vmul.f32 %v522, %v538
      %v541 = vmul.f32 %v523, %v539
      %v542 = vlaneseq
      %v543 = vshrl.u32 %v542, 7
      %v544 = vsub.s32 2, %v543
      %v545 = vrot.slane %v507, %v544
      %v546 = vadd.f32 %v400, %v545
      %v547 = vadd.f32 %v405, %v545
      %v548 = vsub.f32 %v546, %v540
      %v549 = vsub.f32 %v547, %v541
      %v550 = vadd.f32 %v548, 1e-07
      %v551 = vadd.f32 %v549, 1e-07
      %v552 = vrcp.pop %v550
      %v553 = vrcp.pop %v551
      %v554 = vmul.f32 %v540, %v552
      %v555 = vmul.f32 %v541, %v553
      %v556 = vld [vmem:[%s325] sm:$0xf]
      %v557 = vld [vmem:[%s325 + $0x4] sm:$0xf]
      %v558 = vunpack.c.l.bf16 %v556
      %v559 = vunpack.c.l.bf16 %v557
      %v560 = vand.u32 2147483647, %v558
      %v561 = vand.u32 2147483647, %v559
      %v562 = vsub.f32 0.0, %v560
      %v563 = vsub.f32 0.0, %v561
      %v564 = vmul.f32 %v562, 1.442695
      %v565 = vpow.pop %v564
      %v566 = vmul.f32 %v563, 1.442695
      %v567 = vpow.pop %v566
      %v568 = vadd.f32 %v565, 1.0
      %v569 = vadd.f32 %v567, 1.0
      %v570 = vrcp.pop %v568
      %v571 = vrcp.pop %v569
      %vm572 = vcmp.ge.f32.partialorder %v558, 0.0
      %vm573 = vcmp.ge.f32.partialorder %v559, 0.0
      %v574 = vmul.f32 %v565, %v570
      %v575 = vmul.f32 %v567, %v571
      %v576 = vsel %vm572, %v570, %v574
      %v577 = vsel %vm573, %v571, %v575
      %v578 = vmul.f32 %v554, %v576
      %v579 = vmul.f32 %v555, %v577
      %v580 = vmax.f32 %v578, 0.0
      %v581 = vmax.f32 %v579, 0.0
      %v582 = vrsqrt.pop %v580
      %v583 = vmul.f32 %v580, %v582
      %vm584 = vcmp.eq.f32.partialorder %v580, inf
      %v585 = vsel %vm584, %v580, %v583
      %vm586 = vcmp.eq.f32.partialorder %v580, 0.0
      %v587 = vand.u32 %v580, 2147483648
      %v588 = vsel %vm586, %v587, %v585
      %v589 = vrsqrt.pop %v581
      %v590 = vmul.f32 %v581, %v589
      %vm591 = vcmp.eq.f32.partialorder %v581, inf
      %v592 = vsel %vm591, %v581, %v590
      %vm593 = vcmp.eq.f32.partialorder %v581, 0.0
      %v594 = vand.u32 %v581, 2147483648
      %v595 = vsel %vm593, %v594, %v592
      %v596 = vmax.f32 %v588, %v595
      %v597 = vrot.slane %v596, 4
      %v598 = vmax.f32 %v596, %v597
      %v599 = vrot.slane %v598, 2
      %v600 = vmax.f32 %v598, %v599
      %v601 = vrot.slane %v600, 1
      %v602 = vmax.f32 %v600, %v601
      %vm603 = vcmp.eq.f32.partialorder %v588, %v602
      %vm604 = vcmp.eq.f32.partialorder %v595, %v602
      %v605 = vsel %vm603, %v588, 0.0
      %v606 = vsel %vm604, %v595, 0.0
      %v607 = vpack.c.bf16 %v606, %v605
      %v609 = vunpack.c.l.b16 %v607
      %v610 = vunpack.c.h.b16 %v607
      %v611 = vpack.c.b16 %v609, %v609
      %v612 = vpack.c.b16 %v610, %v610
      %615 = vst [vmem:[%s341] sm:$0xf] %v611
      %616 = vst [vmem:[%s341 + $0x4] sm:$0xf] %v612
      %p617 = scmp.lt.s32.totalorder %s21, 1
      %s618 = scalar_select %p617, %s21, 1
      %p619 = scmp.lt.s32.totalorder %s22, 0
      %s620 = scalar_select %p619, %s22, 0
      %s621 = smul.addr %s618, 2
      %s622 = sadd.s32 %s620, %s621
      %s623 = smul.addr %s622, 4
      %s624 = scalar_lea.vmem %s4, %s623
      %p625 = scmp.lt.s32.totalorder %s21, 1
      %s626 = scalar_select %p625, %s21, 1
      %p627 = scmp.lt.s32.totalorder %s22, 0
      %s628 = scalar_select %p627, %s22, 0
      %s629 = smul.addr %s626, 2
      %s630 = sadd.s32 %s628, %s629
      %s631 = smul.addr %s630, 4
      %s632 = scalar_lea.vmem %s5, %s631
      // Predicated region
      $region37: #{multibox_loss.3} parent=35 // pred_check
        %p633 = pneg %p157
      $region38: #{multibox_loss.3} parent=35 // pred_check_branch
        %635 = sbr.rel (%p633) target = $region40
      $region39: #{multibox_loss.3} parent=35 // pred_region
        _
      $region40: #{multibox_loss.3} parent=35 // pred_fallthru
        _
      // Predicated region
      $region41: #{multibox_loss.3} parent=35 // pred_check
        %p636 = pneg %p185
      $region42: #{multibox_loss.3} parent=35 // pred_check_branch
        %638 = sbr.rel (%p636) target = $region44
      $region43: #{multibox_loss.3} parent=35 // pred_region
        _
      $region44: #{multibox_loss.3} parent=35 // pred_fallthru
        _
    $region36: #{multibox_loss.3} parent=5 // pred_fallthru
      _
    %p639 = scmp.le.s32.totalorder 2, %s12
    // Predicated region
    $region45: #{multibox_loss.3} parent=5 // pred_check
      %p640 = pneg %p639
    $region46: #{multibox_loss.3} parent=5 // pred_check_branch
      %642 = sbr.rel (%p640) target = $region48
    $region47: #{multibox_loss.3} parent=5 // pred_region
      %s643 = ssub.s32 %s12, 2
      // Predicated region
      $region49: #{multibox_loss.3} parent=47 // pred_check
        %p644 = pneg %p163
      $region50: #{multibox_loss.3} parent=47 // pred_check_branch
        %646 = sbr.rel (%p644) target = $region52
      $region51: #{multibox_loss.3} parent=47 // pred_region
        %p647 = scmp.lt.s32.totalorder %s23, 1
        %s648 = scalar_select %p647, %s23, 1
        %p649 = scmp.lt.s32.totalorder %s24, 0
        %s650 = scalar_select %p649, %s24, 0
        %s651 = smul.addr %s648, 2
        %s652 = sadd.s32 %s650, %s651
        %s653 = smul.addr %s652, 4
        %s654 = scalar_lea.vmem %s4, %s653
      $region52: #{multibox_loss.3} parent=47 // pred_fallthru
        _
      // Predicated region
      $region53: #{multibox_loss.3} parent=47 // pred_check
        %p655 = pneg %p191
      $region54: #{multibox_loss.3} parent=47 // pred_check_branch
        %657 = sbr.rel (%p655) target = $region56
      $region55: #{multibox_loss.3} parent=47 // pred_region
        %p658 = scmp.lt.s32.totalorder %s23, 1
        %s659 = scalar_select %p658, %s23, 1
        %p660 = scmp.lt.s32.totalorder %s24, 0
        %s661 = scalar_select %p660, %s24, 0
        %s662 = smul.addr %s659, 2
        %s663 = sadd.s32 %s661, %s662
        %s664 = smul.addr %s663, 4
        %s665 = scalar_lea.vmem %s5, %s664
      $region56: #{multibox_loss.3} parent=47 // pred_fallthru
        _
    $region48: #{multibox_loss.3} parent=5 // pred_fallthru
      _
  $region6: #{multibox_loss.3} parent=0 // loop_footer
    %s16 = sadd.s32 1, %s12
  $region7: #{multibox_loss.3} parent=0 // loop_footer_branch
    %11 = sbr.rel target = $region3
  $region8: #{multibox_loss.3} parent=0 // loop_exit
    _

// kernel: multibox_loss.5
$region0: #{multibox_loss.5}
  #allocation0 [shape = 'u32[]', space=smem, size = 0x4, offset = 0x4, fixed_abs, tag = 'smem constant byte address 0x4 - core index']
  #allocation1 [shape = 'u32[144,128]{1,0:T(1,128)}', space=vmem, size = 0x12000, scoped, tag = 'internal scratch']
  #allocation2 [shape = 'f32[1]{0:T(128)}', space=smem, size = 0x200, scoped, tag = 'scratch operand']
  %s0 = inlined_call_operand.vmem [shape: bf16[64,128], index: 0, kind: input, shape index: {}]
  %s1 = inlined_call_operand.vmem [shape: f32[2,8,128], index: 1, kind: output, shape index: {}]
  %s2 = sld [smem:[#allocation0]]
  $region45: #{multibox_loss.5} parent=0
    _
  %s4 = ssub.s32 1, %s2
  %s5 = scalar_select 0, %s4, %s2
  loop: start=0, step=1, limit=4
  $region2: #{multibox_loss.5} parent=0 // loop_pre_header
    _
  $region3: #{multibox_loss.5} parent=0 // loop_header
    %s7 = sphi 0, %s11
    %p8 = scmp.ge.s32.totalorder %s7, 4
    %s14 = sphi 0, %s26
    %s15 = sphi 0, %s22
    %s16 = sphi 0, %s14
    %s17 = sphi 0, %s15
    %s18 = sphi 0, %s16
    %s19 = sphi 0, %s17
    %s31 = sphi 0, %s33
    %s34 = sphi 0, %s31
    %s35 = sphi 0, %s34
    %s51 = sphi 0, %s35
    %s57 = sphi 0, %s59
    %s60 = sphi 0, %s57
    %s61 = sphi 0, %s60
    %s77 = sphi 0, %s61
  $region4: #{multibox_loss.5} parent=0 // loop_header_branch
    %10 = sbr.rel (%p8) target = $region8
  $region5: #{multibox_loss.5} parent=0 // loop_body
    %s12 = ssub.s32 %s7, 1
    %s13 = ssub.s32 %s7, 2
    %s20 = sadd.s32 1, %s15
    %p21 = scmp.ge.s32.totalorder %s20, 1
    %s22 = scalar_select %p21, 0, %s20
    %s23 = sadd.s32 1, %s14
    %s24 = scalar_select %p21, %s23, %s14
    %p25 = scmp.ge.s32.totalorder %s24, 2
    %s26 = scalar_select %p25, 0, %s24
    %s27 = sadd.s32 %s14, %s15
    %s28 = sadd.s32 %s26, %s22
    %s29 = ssub.s32 %s27, %s28
    %p30 = scmp.eq.s32.totalorder %s29, 0
    %s32 = sadd.s32 %s31, 1
    %s33 = scalar_select %p30, %s31, %s32
    %p36 = pneg %p30
    %p37 = scmp.eq.s32.totalorder %s7, 1
    %p38 = por %p36, %p37
    %p39 = scmp.ne.s32.totalorder %s31, %s34
    %p40 = scmp.eq.s32.totalorder %s7, 0
    %p41 = por %p39, %p40
    %p42 = scmp.ne.s32.totalorder %s31, %s34
    %p43 = scmp.eq.s32.totalorder %s12, 1
    %p44 = por %p42, %p43
    %p45 = scmp.ne.s32.totalorder %s34, %s35
    %p46 = scmp.eq.s32.totalorder %s12, 0
    %p47 = por %p45, %p46
    %p48 = scmp.ne.s32.totalorder %s34, %s35
    %p49 = scmp.eq.s32.totalorder %s13, 1
    %p50 = por %p48, %p49
    %p52 = scmp.ne.s32.totalorder %s35, %s51
    %p53 = scmp.eq.s32.totalorder %s13, 0
    %p54 = por %p52, %p53
    %s55 = ssub.s32 %s14, %s26
    %p56 = scmp.eq.s32.totalorder %s55, 0
    %s58 = sadd.s32 %s57, 1
    %s59 = scalar_select %p56, %s57, %s58
    %p62 = pneg %p56
    %p63 = scmp.eq.s32.totalorder %s7, 1
    %p64 = por %p62, %p63
    %p65 = scmp.ne.s32.totalorder %s57, %s60
    %p66 = scmp.eq.s32.totalorder %s7, 0
    %p67 = por %p65, %p66
    %p68 = scmp.ne.s32.totalorder %s57, %s60
    %p69 = scmp.eq.s32.totalorder %s12, 1
    %p70 = por %p68, %p69
    %p71 = scmp.ne.s32.totalorder %s60, %s61
    %p72 = scmp.eq.s32.totalorder %s12, 0
    %p73 = por %p71, %p72
    %p74 = scmp.ne.s32.totalorder %s60, %s61
    %p75 = scmp.eq.s32.totalorder %s13, 1
    %p76 = por %p74, %p75
    %p78 = scmp.ne.s32.totalorder %s61, %s77
    %p79 = scmp.eq.s32.totalorder %s13, 0
    %p80 = por %p78, %p79
    %p81 = scmp.le.s32.totalorder 1, %s7
    %p82 = scmp.lt.s32.totalorder %s7, 3
    %p83 = pnand %p81, %p82
    %p84 = pneg %p83
    // Predicated region
    $region9: #{multibox_loss.5} parent=5 // pred_check
      _
    $region10: #{multibox_loss.5} parent=5 // pred_check_branch
      %86 = sbr.rel (%p83) target = $region12
    $region11: #{multibox_loss.5} parent=5 // pred_region
      %s87 = ssub.s32 %s7, 1
    $region12: #{multibox_loss.5} parent=5 // pred_fallthru
      _
    %p88 = scmp.lt.s32.totalorder %s7, 2
    // Predicated region
    $region13: #{multibox_loss.5} parent=5 // pred_check
      %p89 = pneg %p88
    $region14: #{multibox_loss.5} parent=5 // pred_check_branch
      %91 = sbr.rel (%p89) target = $region16
    $region15: #{multibox_loss.5} parent=5 // pred_region
      // Predicated region
      $region17: #{multibox_loss.5} parent=15 // pred_check
        %p92 = pneg %p41
      $region18: #{multibox_loss.5} parent=15 // pred_check_branch
        %94 = sbr.rel (%p92) target = $region20
      $region19: #{multibox_loss.5} parent=15 // pred_region
        %s95 = sadd.s32 %s14, %s15
        %s96 = smul.u32 4, %s95
        %p97 = scmp.lt.s32.totalorder %s96, 7
        %s98 = scalar_select %p97, %s96, 7
        %s99 = smul.addr %s98, 4
        %s100 = scalar_lea.vmem %s0, %s99
        %s101 = sadd.s32 %s14, %s15
        %s102 = smul.u32 4, %s101
      $region20: #{multibox_loss.5} parent=15 // pred_fallthru
        _
    $region16: #{multibox_loss.5} parent=5 // pred_fallthru
      _
    %p103 = scmp.le.s32.totalorder 1, %s7
    %p104 = scmp.lt.s32.totalorder %s7, 3
    %p105 = pnand %p103, %p104
    %p106 = pneg %p105
    // Predicated region
    $region21: #{multibox_loss.5} parent=5 // pred_check
      _
    $region22: #{multibox_loss.5} parent=5 // pred_check_branch
      %108 = sbr.rel (%p105) target = $region24
    $region23: #{multibox_loss.5} parent=5 // pred_region
      %s109 = ssub.s32 %s7, 1
      %s110 = sadd.s32 %s16, %s17
      %s111 = smul.u32 4, %s110
      %p112 = scmp.lt.s32.totalorder %s111, 7
      %s113 = scalar_select %p112, %s111, 7
      %s114 = smul.addr %s113, 4
      %s115 = scalar_lea.vmem %s0, %s114
      %p116 = pneg %p47
      %p117 = pneg %p44
      %p118 = pneg %p73
      %p119 = pneg %p70
      %p120 = scmp.lt.s32.totalorder %s16, 1
      %s121 = scalar_select %p120, %s16, 1
      %s122 = smul.addr %s121, 8
      %s123 = scalar_lea.vmem %s1, %s122
      %s124 = sadd.s32 %s16, %s17
      %s125 = smul.u32 4, %s124
      %p126 = scmp.lt.s32.totalorder %s125, 7
      %s127 = scalar_select %p126, %s125, 7
      %s128 = smul.addr %s127, 4
      %s129 = scalar_lea.vmem %s0, %s128
      %s130 = sadd.s32 %s16, %s17
      %s131 = smul.u32 4, %s130
      %p132 = scmp.lt.s32.totalorder %s16, 1
      %s133 = scalar_select %p132, %s16, 1
      %s134 = smul.addr %s133, 8
      %s135 = scalar_lea.vmem %s1, %s134
      %p136 = scmp.eq.s32.totalorder %s17, 0
      // Predicated region
      $region25: #{multibox_loss.5} parent=23 // pred_check
        %p137 = pneg %p136
      $region26: #{multibox_loss.5} parent=23 // pred_check_branch
        %139 = sbr.rel (%p137) target = $region28
      $region27: #{multibox_loss.5} parent=23 // pred_region
        %s140 = scalar_lea.smem [#allocation2], 0
        %141 = sst [smem:[%s140]] 0.0
      $region28: #{multibox_loss.5} parent=23 // pred_fallthru
        _
      %v142 = vld [vmem:[%s129] sm:$0xf]
      %v143 = vld [vmem:[%s129 + $0x4] sm:$0xf]
      %v144 = vld [vmem:[%s129 + $0x8] sm:$0xf]
      %v145 = vld [vmem:[%s129 + $0xc] sm:$0xf]
      %v146 = vunpack.c.l.bf16 %v142
      %v147 = vunpack.c.l.bf16 %v143
      %v148 = vunpack.c.l.bf16 %v144
      %v149 = vunpack.c.l.bf16 %v145
      %v150 = vand.u32 2147483647, %v146
      %v151 = vand.u32 2147483647, %v147
      %v152 = vand.u32 2147483647, %v148
      %v153 = vand.u32 2147483647, %v149
      %v154 = vsub.f32 0.0, %v150
      %v155 = vsub.f32 0.0, %v151
      %v156 = vsub.f32 0.0, %v152
      %v157 = vsub.f32 0.0, %v153
      %v158 = vmul.f32 %v154, 1.442695
      %v159 = vpow.pop %v158
      %v160 = vmul.f32 %v155, 1.442695
      %v161 = vpow.pop %v160
      %v162 = vmul.f32 %v156, 1.442695
      %v163 = vpow.pop %v162
      %v164 = vmul.f32 %v157, 1.442695
      %v165 = vpow.pop %v164
      %v166 = vadd.f32 %v159, 1.0
      %v167 = vadd.f32 %v161, 1.0
      %v168 = vadd.f32 %v163, 1.0
      %v169 = vadd.f32 %v165, 1.0
      %v170 = vrcp.pop %v166
      %v171 = vrcp.pop %v167
      %v172 = vrcp.pop %v168
      %v173 = vrcp.pop %v169
      %vm174 = vcmp.ge.f32.partialorder %v146, 0.0
      %vm175 = vcmp.ge.f32.partialorder %v147, 0.0
      %vm176 = vcmp.ge.f32.partialorder %v148, 0.0
      %vm177 = vcmp.ge.f32.partialorder %v149, 0.0
      %v178 = vmul.f32 %v159, %v170
      %v179 = vmul.f32 %v161, %v171
      %v180 = vmul.f32 %v163, %v172
      %v181 = vmul.f32 %v165, %v173
      %v182 = vsel %vm174, %v170, %v178
      %v183 = vsel %vm175, %v171, %v179
      %v184 = vsel %vm176, %v172, %v180
      %v185 = vsel %vm177, %v173, %v181
      %v186 = vmax.f32 %v146, 0.0
      %v187 = vmax.f32 %v147, 0.0
      %v188 = vmax.f32 %v148, 0.0
      %v189 = vmax.f32 %v149, 0.0
      %v190 = vlog2.pop %v166
      %v191 = vmul.f32 %v190, 0.6931472
      %v192 = vlog2.pop %v167
      %v193 = vmul.f32 %v192, 0.6931472
      %v194 = vlog2.pop %v168
      %v195 = vmul.f32 %v194, 0.6931472
      %v196 = vlog2.pop %v169
      %v197 = vmul.f32 %v196, 0.6931472
      %v198 = vadd.f32 %v186, %v191
      %v199 = vadd.f32 %v187, %v193
      %v200 = vadd.f32 %v188, %v195
      %v201 = vadd.f32 %v189, %v197
      %s202 = sld [smem:[#allocation2]]
      %v203 = vmul.f32 %v198, %v182
      %v204 = vmul.f32 %v199, %v183
      %v205 = vmul.f32 %v200, %v184
      %v206 = vmul.f32 %v201, %v185
      %v207 = vmul.f32 %v203, %v182
      %v208 = vmul.f32 %v204, %v183
      %v209 = vmul.f32 %v205, %v184
      %v210 = vmul.f32 %v206, %v185
      %v211 = vadd.f32 %v207, %v208
      %v212 = vadd.f32 %v211, %v209
      %v213 = vadd.f32 %v212, %v210
      %214 = vadd.xlane.f32.xlu0 %v213
      %v215 = vpop.xlane.xlu0 %214
      %v216 = vrot.slane %v215, 4
      %v217 = vadd.f32 %v215, %v216
      %v218 = vrot.slane %v217, 2
      %v219 = vadd.f32 %v217, %v218
      %v220 = vrot.slane %v219, 1
      %v221 = vadd.f32 %v219, %v220
      %s222 = vtos %v221
      %s223 = sadd.f32 %s202, %s222
      %s224 = scalar_lea.smem [#allocation2], 0
      %225 = sst [smem:[%s224]] %s223
      // Predicated region
      $region29: #{multibox_loss.5} parent=23 // pred_check
        %p226 = pneg %p136
      $region30: #{multibox_loss.5} parent=23 // pred_check_branch
        %228 = sbr.rel (%p226) target = $region32
      $region31: #{multibox_loss.5} parent=23 // pred_region
        %v229 = vlaneseq
        %v230 = vshrl.u32 %v229, 7
        %v231 = vlaneseq
        %v232 = vand.u32 %v231, 127
        %vm233 = vcmp.eq.s32.totalorder %v230, 0
        %vm234 = vcmp.eq.s32.totalorder %v232, 0
        %vm235 = vmand %vm233, %vm234
        %s236 = sld [smem:[#allocation2]]
        %v237 = vstv %s236
        %v238 = vsel %vm235, %v237, 0.0
        %239 = vst [vmem:[%s135] sm:$0xff] %v238
      $region32: #{multibox_loss.5} parent=23 // pred_fallthru
        _
      %p240 = scmp.lt.s32.totalorder %s16, 1
      %s241 = scalar_select %p240, %s16, 1
      %s242 = smul.addr %s241, 8
      %s243 = scalar_lea.vmem %s1, %s242
      // Predicated region
      $region33: #{multibox_loss.5} parent=23 // pred_check
        %p244 = pneg %p70
      $region34: #{multibox_loss.5} parent=23 // pred_check_branch
        %246 = sbr.rel (%p244) target = $region36
      $region35: #{multibox_loss.5} parent=23 // pred_region
        _
      $region36: #{multibox_loss.5} parent=23 // pred_fallthru
        _
    $region24: #{multibox_loss.5} parent=5 // pred_fallthru
      _
    %p247 = scmp.le.s32.totalorder 2, %s7
    // Predicated region
    $region37: #{multibox_loss.5} parent=5 // pred_check
      %p248 = pneg %p247
    $region38: #{multibox_loss.5} parent=5 // pred_check_branch
      %250 = sbr.rel (%p248) target = $region40
    $region39: #{multibox_loss.5} parent=5 // pred_region
      %s251 = ssub.s32 %s7, 2
      // Predicated region
      $region41: #{multibox_loss.5} parent=39 // pred_check
        %p252 = pneg %p76
      $region42: #{multibox_loss.5} parent=39 // pred_check_branch
        %254 = sbr.rel (%p252) target = $region44
      $region43: #{multibox_loss.5} parent=39 // pred_region
        %p255 = scmp.lt.s32.totalorder %s18, 1
        %s256 = scalar_select %p255, %s18, 1
        %s257 = smul.addr %s256, 8
        %s258 = scalar_lea.vmem %s1, %s257
      $region44: #{multibox_loss.5} parent=39 // pred_fallthru
        _
    $region40: #{multibox_loss.5} parent=5 // pred_fallthru
      _
  $region6: #{multibox_loss.5} parent=0 // loop_footer
    %s11 = sadd.s32 1, %s7
  $region7: #{multibox_loss.5} parent=0 // loop_footer_branch
    %6 = sbr.rel target = $region3
  $region8: #{multibox_loss.5} parent=0 // loop_exit
    _

// kernel: multibox_loss.4
$region0: #{multibox_loss.4}
  #allocation0 [shape = 'u32[]', space=smem, size = 0x4, offset = 0x4, fixed_abs, tag = 'smem constant byte address 0x4 - core index']
  #allocation1 [shape = 'u32[144,128]{1,0:T(1,128)}', space=vmem, size = 0x12000, scoped, tag = 'internal scratch']
  #allocation2 [shape = 'f32[1]{0:T(128)}', space=smem, size = 0x200, scoped, tag = 'scratch operand']
  #allocation3 [shape = 's32[1]{0}', space=sflag, size = 0x4, scoped, tag = 'scoped memory for multibox_loss.4']
  #allocation4 [shape = 'u8[1024]{0}', space=smem, size = 0x400, scoped, tag = 'prefetched SMEM operand 0']
  %s0 = inlined_call_operand.vmem [shape: s32[2,1], index: 0, kind: input, shape index: {}]
  %s1 = inlined_call_operand.vmem [shape: f32[2,4,8,128], index: 1, kind: input, shape index: {}]
  %s2 = inlined_call_operand.vmem [shape: f32[2,4,8,128], index: 2, kind: input, shape index: {}]
  %s3 = inlined_call_operand.vmem [shape: f32[4,8,128], index: 3, kind: input, shape index: {}]
  %s4 = inlined_call_operand.vmem [shape: f32[2,1,8,128], index: 4, kind: input, shape index: {}]
  %s5 = inlined_call_operand.vmem [shape: f32[2,8,128], index: 5, kind: output, shape index: {}]
  %s6 = sld [smem:[#allocation0]]
  $region61: #{multibox_loss.4} parent=0
    _
  %s8 = ssub.s32 1, %s6
  %s9 = scalar_select 0, %s8, %s6
  %s10 = sshll.u32 %s0, 4
  %s11 = int_to_ptr.vmem [resolvable:$true] %s10
  %13 = dma.vmem_to_smem %s11, 32, [#allocation4], [#allocation3]
  %14 = dma.done [#allocation3], 32
  %15 = sfence
  loop: start=0, step=1, limit=4
  $region2: #{multibox_loss.4} parent=0 // loop_pre_header
    _
  $region3: #{multibox_loss.4} parent=0 // loop_header
    %s17 = sphi 0, %s21
    %p18 = scmp.ge.s32.totalorder %s17, 4
    %s24 = sphi 0, %s36
    %s25 = sphi 0, %s32
    %s26 = sphi 0, %s24
    %s27 = sphi 0, %s25
    %s28 = sphi 0, %s26
    %s29 = sphi 0, %s27
    %s41 = sphi 0, %s43
    %s44 = sphi 0, %s41
    %s45 = sphi 0, %s44
    %s61 = sphi 0, %s45
    %s69 = sphi 0, %s71
    %s72 = sphi 0, %s69
    %s73 = sphi 0, %s72
    %s89 = sphi 0, %s73
    %s95 = sphi 0, %s97
    %s98 = sphi 0, %s95
    %s99 = sphi 0, %s98
    %s115 = sphi 0, %s99
    %s123 = sphi 0, %s125
    %s126 = sphi 0, %s123
    %s127 = sphi 0, %s126
    %s143 = sphi 0, %s127
    %s149 = sphi 0, %s151
    %s152 = sphi 0, %s149
    %s153 = sphi 0, %s152
    %s169 = sphi 0, %s153
  $region4: #{multibox_loss.4} parent=0 // loop_header_branch
    %20 = sbr.rel (%p18) target = $region8
  $region5: #{multibox_loss.4} parent=0 // loop_body
    %s22 = ssub.s32 %s17, 1
    %s23 = ssub.s32 %s17, 2
    %s30 = sadd.s32 1, %s25
    %p31 = scmp.ge.s32.totalorder %s30, 1
    %s32 = scalar_select %p31, 0, %s30
    %s33 = sadd.s32 1, %s24
    %s34 = scalar_select %p31, %s33, %s24
    %p35 = scmp.ge.s32.totalorder %s34, 2
    %s36 = scalar_select %p35, 0, %s34
    %s37 = ssub.s32 %s24, %s36
    %s38 = ssub.s32 %s25, %s32
    %s39 = sor.u32 %s37, %s38
    %p40 = scmp.eq.s32.totalorder %s39, 0
    %s42 = sadd.s32 %s41, 1
    %s43 = scalar_select %p40, %s41, %s42
    %p46 = pneg %p40
    %p47 = scmp.eq.s32.totalorder %s17, 1
    %p48 = por %p46, %p47
    %p49 = scmp.ne.s32.totalorder %s41, %s44
    %p50 = scmp.eq.s32.totalorder %s17, 0
    %p51 = por %p49, %p50
    %p52 = scmp.ne.s32.totalorder %s41, %s44
    %p53 = scmp.eq.s32.totalorder %s22, 1
    %p54 = por %p52, %p53
    %p55 = scmp.ne.s32.totalorder %s44, %s45
    %p56 = scmp.eq.s32.totalorder %s22, 0
    %p57 = por %p55, %p56
    %p58 = scmp.ne.s32.totalorder %s44, %s45
    %p59 = scmp.eq.s32.totalorder %s23, 1
    %p60 = por %p58, %p59
    %p62 = scmp.ne.s32.totalorder %s45, %s61
    %p63 = scmp.eq.s32.totalorder %s23, 0
    %p64 = por %p62, %p63
    %s65 = ssub.s32 %s24, %s36
    %s66 = ssub.s32 %s25, %s32
    %s67 = sor.u32 %s65, %s66
    %p68 = scmp.eq.s32.totalorder %s67, 0
    %s70 = sadd.s32 %s69, 1
    %s71 = scalar_select %p68, %s69, %s70
    %p74 = pneg %p68
    %p75 = scmp.eq.s32.totalorder %s17, 1
    %p76 = por %p74, %p75
    %p77 = scmp.ne.s32.totalorder %s69, %s72
    %p78 = scmp.eq.s32.totalorder %s17, 0
    %p79 = por %p77, %p78
    %p80 = scmp.ne.s32.totalorder %s69, %s72
    %p81 = scmp.eq.s32.totalorder %s22, 1
    %p82 = por %p80, %p81
    %p83 = scmp.ne.s32.totalorder %s72, %s73
    %p84 = scmp.eq.s32.totalorder %s22, 0
    %p85 = por %p83, %p84
    %p86 = scmp.ne.s32.totalorder %s72, %s73
    %p87 = scmp.eq.s32.totalorder %s23, 1
    %p88 = por %p86, %p87
    %p90 = scmp.ne.s32.totalorder %s73, %s89
    %p91 = scmp.eq.s32.totalorder %s23, 0
    %p92 = por %p90, %p91
    %s93 = ssub.s32 %s25, %s32
    %p94 = scmp.eq.s32.totalorder %s93, 0
    %s96 = sadd.s32 %s95, 1
    %s97 = scalar_select %p94, %s95, %s96
    %p100 = pneg %p94
    %p101 = scmp.eq.s32.totalorder %s17, 1
    %p102 = por %p100, %p101
    %p103 = scmp.ne.s32.totalorder %s95, %s98
    %p104 = scmp.eq.s32.totalorder %s17, 0
    %p105 = por %p103, %p104
    %p106 = scmp.ne.s32.totalorder %s95, %s98
    %p107 = scmp.eq.s32.totalorder %s22, 1
    %p108 = por %p106, %p107
    %p109 = scmp.ne.s32.totalorder %s98, %s99
    %p110 = scmp.eq.s32.totalorder %s22, 0
    %p111 = por %p109, %p110
    %p112 = scmp.ne.s32.totalorder %s98, %s99
    %p113 = scmp.eq.s32.totalorder %s23, 1
    %p114 = por %p112, %p113
    %p116 = scmp.ne.s32.totalorder %s99, %s115
    %p117 = scmp.eq.s32.totalorder %s23, 0
    %p118 = por %p116, %p117
    %s119 = ssub.s32 %s24, %s36
    %s120 = ssub.s32 %s25, %s32
    %s121 = sor.u32 %s119, %s120
    %p122 = scmp.eq.s32.totalorder %s121, 0
    %s124 = sadd.s32 %s123, 1
    %s125 = scalar_select %p122, %s123, %s124
    %p128 = pneg %p122
    %p129 = scmp.eq.s32.totalorder %s17, 1
    %p130 = por %p128, %p129
    %p131 = scmp.ne.s32.totalorder %s123, %s126
    %p132 = scmp.eq.s32.totalorder %s17, 0
    %p133 = por %p131, %p132
    %p134 = scmp.ne.s32.totalorder %s123, %s126
    %p135 = scmp.eq.s32.totalorder %s22, 1
    %p136 = por %p134, %p135
    %p137 = scmp.ne.s32.totalorder %s126, %s127
    %p138 = scmp.eq.s32.totalorder %s22, 0
    %p139 = por %p137, %p138
    %p140 = scmp.ne.s32.totalorder %s126, %s127
    %p141 = scmp.eq.s32.totalorder %s23, 1
    %p142 = por %p140, %p141
    %p144 = scmp.ne.s32.totalorder %s127, %s143
    %p145 = scmp.eq.s32.totalorder %s23, 0
    %p146 = por %p144, %p145
    %s147 = ssub.s32 %s24, %s36
    %p148 = scmp.eq.s32.totalorder %s147, 0
    %s150 = sadd.s32 %s149, 1
    %s151 = scalar_select %p148, %s149, %s150
    %p154 = pneg %p148
    %p155 = scmp.eq.s32.totalorder %s17, 1
    %p156 = por %p154, %p155
    %p157 = scmp.ne.s32.totalorder %s149, %s152
    %p158 = scmp.eq.s32.totalorder %s17, 0
    %p159 = por %p157, %p158
    %p160 = scmp.ne.s32.totalorder %s149, %s152
    %p161 = scmp.eq.s32.totalorder %s22, 1
    %p162 = por %p160, %p161
    %p163 = scmp.ne.s32.totalorder %s152, %s153
    %p164 = scmp.eq.s32.totalorder %s22, 0
    %p165 = por %p163, %p164
    %p166 = scmp.ne.s32.totalorder %s152, %s153
    %p167 = scmp.eq.s32.totalorder %s23, 1
    %p168 = por %p166, %p167
    %p170 = scmp.ne.s32.totalorder %s153, %s169
    %p171 = scmp.eq.s32.totalorder %s23, 0
    %p172 = por %p170, %p171
    %p173 = scmp.le.s32.totalorder 1, %s17
    %p174 = scmp.lt.s32.totalorder %s17, 3
    %p175 = pnand %p173, %p174
    %p176 = pneg %p175
    // Predicated region
    $region9: #{multibox_loss.4} parent=5 // pred_check
      _
    $region10: #{multibox_loss.4} parent=5 // pred_check_branch
      %178 = sbr.rel (%p175) target = $region12
    $region11: #{multibox_loss.4} parent=5 // pred_region
      %s179 = ssub.s32 %s17, 1
      // Predicated region
      $region13: #{multibox_loss.4} parent=11 // pred_check
        %p180 = pneg %p111
      $region14: #{multibox_loss.4} parent=11 // pred_check_branch
        %182 = sbr.rel (%p180) target = $region16
      $region15: #{multibox_loss.4} parent=11 // pred_region
        %p183 = scmp.lt.s32.totalorder %s27, 0
        %s184 = scalar_select %p183, %s27, 0
        %s185 = smul.addr %s184, 8
        %s186 = scalar_lea.vmem %s3, %s185
      $region16: #{multibox_loss.4} parent=11 // pred_fallthru
        _
    $region12: #{multibox_loss.4} parent=5 // pred_fallthru
      _
    %p187 = scmp.lt.s32.totalorder %s17, 2
    // Predicated region
    $region17: #{multibox_loss.4} parent=5 // pred_check
      %p188 = pneg %p187
    $region18: #{multibox_loss.4} parent=5 // pred_check_branch
      %190 = sbr.rel (%p188) target = $region20
    $region19: #{multibox_loss.4} parent=5 // pred_region
      // Predicated region
      $region21: #{multibox_loss.4} parent=19 // pred_check
        %p191 = pneg %p51
      $region22: #{multibox_loss.4} parent=19 // pred_check_branch
        %193 = sbr.rel (%p191) target = $region24
      $region23: #{multibox_loss.4} parent=19 // pred_region
        %p194 = scmp.lt.s32.totalorder %s24, 1
        %s195 = scalar_select %p194, %s24, 1
        %p196 = scmp.lt.s32.totalorder %s25, 0
        %s197 = scalar_select %p196, %s25, 0
        %s198 = smul.addr %s195, 4
        %s199 = sadd.s32 %s197, %s198
        %s200 = smul.addr %s199, 8
        %s201 = scalar_lea.vmem %s1, %s200
      $region24: #{multibox_loss.4} parent=19 // pred_fallthru
        _
      // Predicated region
      $region25: #{multibox_loss.4} parent=19 // pred_check
        %p202 = pneg %p79
      $region26: #{multibox_loss.4} parent=19 // pred_check_branch
        %204 = sbr.rel (%p202) target = $region28
      $region27: #{multibox_loss.4} parent=19 // pred_region
        %p205 = scmp.lt.s32.totalorder %s24, 1
        %s206 = scalar_select %p205, %s24, 1
        %p207 = scmp.lt.s32.totalorder %s25, 0
        %s208 = scalar_select %p207, %s25, 0
        %s209 = smul.addr %s206, 4
        %s210 = sadd.s32 %s208, %s209
        %s211 = smul.addr %s210, 8
        %s212 = scalar_lea.vmem %s2, %s211
      $region28: #{multibox_loss.4} parent=19 // pred_fallthru
        _
      // Predicated region
      $region29: #{multibox_loss.4} parent=19 // pred_check
        %p213 = pneg %p133
      $region30: #{multibox_loss.4} parent=19 // pred_check_branch
        %215 = sbr.rel (%p213) target = $region32
      $region31: #{multibox_loss.4} parent=19 // pred_region
        %p216 = scmp.lt.s32.totalorder %s24, 1
        %s217 = scalar_select %p216, %s24, 1
        %p218 = scmp.lt.s32.totalorder %s25, 0
        %s219 = scalar_select %p218, %s25, 0
        %s220 = sadd.s32 %s219, %s217
        %s221 = smul.addr %s220, 8
        %s222 = scalar_lea.vmem %s4, %s221
      $region32: #{multibox_loss.4} parent=19 // pred_fallthru
        _
    $region20: #{multibox_loss.4} parent=5 // pred_fallthru
      _
    %p223 = scmp.le.s32.totalorder 1, %s17
    %p224 = scmp.lt.s32.totalorder %s17, 3
    %p225 = pnand %p223, %p224
    %p226 = pneg %p225
    // Predicated region
    $region33: #{multibox_loss.4} parent=5 // pred_check
      _
    $region34: #{multibox_loss.4} parent=5 // pred_check_branch
      %228 = sbr.rel (%p225) target = $region36
    $region35: #{multibox_loss.4} parent=5 // pred_region
      %s229 = ssub.s32 %s17, 1
      %p230 = scmp.lt.s32.totalorder %s26, 1
      %s231 = scalar_select %p230, %s26, 1
      %p232 = scmp.lt.s32.totalorder %s27, 0
      %s233 = scalar_select %p232, %s27, 0
      %s234 = smul.addr %s231, 4
      %s235 = sadd.s32 %s233, %s234
      %s236 = smul.addr %s235, 8
      %s237 = scalar_lea.vmem %s1, %s236
      %p238 = pneg %p57
      %p239 = pneg %p54
      %p240 = scmp.lt.s32.totalorder %s26, 1
      %s241 = scalar_select %p240, %s26, 1
      %p242 = scmp.lt.s32.totalorder %s27, 0
      %s243 = scalar_select %p242, %s27, 0
      %s244 = smul.addr %s241, 4
      %s245 = sadd.s32 %s243, %s244
      %s246 = smul.addr %s245, 8
      %s247 = scalar_lea.vmem %s2, %s246
      %p248 = pneg %p85
      %p249 = pneg %p82
      %p250 = scmp.lt.s32.totalorder %s27, 0
      %s251 = scalar_select %p250, %s27, 0
      %s252 = smul.addr %s251, 8
      %s253 = scalar_lea.vmem %s3, %s252
      %p254 = pneg %p111
      %p255 = pneg %p108
      %p256 = scmp.lt.s32.totalorder %s26, 1
      %s257 = scalar_select %p256, %s26, 1
      %p258 = scmp.lt.s32.totalorder %s27, 0
      %s259 = scalar_select %p258, %s27, 0
      %s260 = sadd.s32 %s259, %s257
      %s261 = smul.addr %s260, 8
      %s262 = scalar_lea.vmem %s4, %s261
      %p263 = pneg %p139
      %p264 = pneg %p136
      %p265 = pneg %p165
      %p266 = pneg %p162
      %p267 = scmp.lt.s32.totalorder %s26, 1
      %s268 = scalar_select %p267, %s26, 1
      %s269 = smul.addr %s268, 8
      %s270 = scalar_lea.vmem %s5, %s269
      %p271 = scmp.lt.s32.totalorder %s26, 1
      %s272 = scalar_select %p271, %s26, 1
      %p273 = scmp.lt.s32.totalorder %s27, 0
      %s274 = scalar_select %p273, %s27, 0
      %s275 = smul.addr %s272, 4
      %s276 = sadd.s32 %s274, %s275
      %s277 = smul.addr %s276, 8
      %s278 = scalar_lea.vmem %s1, %s277
      %p279 = scmp.lt.s32.totalorder %s26, 1
      %s280 = scalar_select %p279, %s26, 1
      %p281 = scmp.lt.s32.totalorder %s27, 0
      %s282 = scalar_select %p281, %s27, 0
      %s283 = smul.addr %s280, 4
      %s284 = sadd.s32 %s282, %s283
      %s285 = smul.addr %s284, 8
      %s286 = scalar_lea.vmem %s2, %s285
      %p287 = scmp.lt.s32.totalorder %s27, 0
      %s288 = scalar_select %p287, %s27, 0
      %s289 = smul.addr %s288, 8
      %s290 = scalar_lea.vmem %s3, %s289
      %p291 = scmp.lt.s32.totalorder %s26, 1
      %s292 = scalar_select %p291, %s26, 1
      %p293 = scmp.lt.s32.totalorder %s27, 0
      %s294 = scalar_select %p293, %s27, 0
      %s295 = sadd.s32 %s294, %s292
      %s296 = smul.addr %s295, 8
      %s297 = scalar_lea.vmem %s4, %s296
      %p298 = scmp.lt.s32.totalorder %s26, 1
      %s299 = scalar_select %p298, %s26, 1
      %s300 = smul.addr %s299, 8
      %s301 = scalar_lea.vmem %s5, %s300
      %p302 = scmp.eq.s32.totalorder %s27, 0
      // Predicated region
      $region37: #{multibox_loss.4} parent=35 // pred_check
        %p303 = pneg %p302
      $region38: #{multibox_loss.4} parent=35 // pred_check_branch
        %305 = sbr.rel (%p303) target = $region40
      $region39: #{multibox_loss.4} parent=35 // pred_region
        %s306 = scalar_lea.smem [#allocation2], 0
        %307 = sst [smem:[%s306]] 0.0
      $region40: #{multibox_loss.4} parent=35 // pred_fallthru
        _
      %s308 = sshra.s32 %s27, 7
      %s309 = sand.u32 %s27, 127
      %s310 = sadd.s32 %s308, %s26
      %s311 = smul.u32 %s310, 128
      %s312 = sshra.s32 %s27, 7
      %s313 = sand.u32 %s27, 127
      %s314 = sadd.s32 %s311, %s313
      %s315 = sld [smem:[#allocation4 + %s314]]
      %p316 = scmp.ne.s32.totalorder %s315, 0
      // Predicated region
      $region41: #{multibox_loss.4} parent=35 // pred_check
        %p317 = pneg %p316
      $region42: #{multibox_loss.4} parent=35 // pred_check_branch
        %319 = sbr.rel (%p317) target = $region44
      $region43: #{multibox_loss.4} parent=35 // pred_region
        %v320 = vld [vmem:[%s278] sm:$0xff]
        %v321 = vld [vmem:[%s278 + $0x8] sm:$0xff]
        %v322 = vld [vmem:[%s278 + $0x10] sm:$0xff]
        %v323 = vld [vmem:[%s278 + $0x18] sm:$0xff]
        %v324 = vld [vmem:[%s286] sm:$0xff]
        %v325 = vld [vmem:[%s286 + $0x8] sm:$0xff]
        %v326 = vld [vmem:[%s286 + $0x10] sm:$0xff]
        %v327 = vld [vmem:[%s286 + $0x18] sm:$0xff]
        %v328 = vld [vmem:[%s290] sm:$0xff]
        %v329 = vld [vmem:[%s290 + $0x8] sm:$0xff]
        %v330 = vld [vmem:[%s290 + $0x10] sm:$0xff]
        %v331 = vld [vmem:[%s290 + $0x18] sm:$0xff]
        %v332 = vld [vmem:[%s297] sm:$0xff]
        %v333 = vmax.f32 %v330, 1e-07
        %v334 = vmax.f32 %v331, 1e-07
        %v335 = vsub.f32 %v326, %v324
        %v336 = vmax.f32 %v335, 1e-07
        %v337 = vsub.f32 %v327, %v325
        %v338 = vmax.f32 %v337, 1e-07
        %v339 = vadd.f32 %v324, %v326
        %v340 = vmul.f32 %v339, 0.5
        %v341 = vsub.f32 %v340, %v328
        %v342 = vmul.f32 %v333, 0.1
        %v343 = vrcp.pop %v342
        %v344 = vmul.f32 %v341, %v343
        %v345 = vadd.f32 %v325, %v327
        %v346 = vmul.f32 %v345, 0.5
        %v347 = vsub.f32 %v346, %v329
        %v348 = vmul.f32 %v334, 0.1
        %v349 = vrcp.pop %v348
        %v350 = vmul.f32 %v347, %v349
        %v351 = vrcp.pop %v333
        %v352 = vmul.f32 %v336, %v351
        %v353 = vlog2.pop %v352
        %v354 = vmul.f32 %v353, 0.6931472
        %v355 = vrcp.pop 0.2
        %v356 = vmul.f32 %v354, %v355
        %v357 = vrcp.pop %v334
        %v358 = vmul.f32 %v338, %v357
        %v359 = vlog2.pop %v358
        %v360 = vmul.f32 %v359, 0.6931472
        %v361 = vmul.f32 %v360, %v355
        %v362 = vsub.f32 %v320, %v344
        %v363 = vand.u32 2147483647, %v362
        %v364 = vmul.f32 %v363, 19.085537
        %v365 = vadd.f32 %v364, 1.0
        %v366 = vmul.f32 %v365, 0.026197849
        %v367 = vrcp.pop 0.11
        %v368 = vmul.f32 %v364, %v367
        %v369 = vadd.f32 %v368, 1.0
        %v370 = vlog2.pop %v369
        %v371 = vmul.f32 %v370, 0.6931472
        %v372 = vmul.f32 %v366, %v371
        %v373 = vmul.f32 %v363, 0.5
        %v374 = vsub.f32 %v372, %v373
        %v375 = vmul.f32 %v363, 1.5
        %v376 = vadd.f32 %v375, 0.078593545
        %v377 = vsub.f32 %v376, 0.055
        %vm378 = vcmp.lt.f32.partialorder %v363, 0.11
        %v379 = vsel %vm378, %v374, %v377
        %v380 = vsub.f32 %v321, %v350
        %v381 = vand.u32 2147483647, %v380
        %v382 = vmul.f32 %v381, 19.085537
        %v383 = vadd.f32 %v382, 1.0
        %v384 = vmul.f32 %v383, 0.026197849
        %v385 = vmul.f32 %v382, %v367
        %v386 = vadd.f32 %v385, 1.0
        %v387 = vlog2.pop %v386
        %v388 = vmul.f32 %v387, 0.6931472
        %v389 = vmul.f32 %v384, %v388
        %v390 = vmul.f32 %v381, 0.5
        %v391 = vsub.f32 %v389, %v390
        %v392 = vmul.f32 %v381, 1.5
        %v393 = vadd.f32 %v392, 0.078593545
        %v394 = vsub.f32 %v393, 0.055
        %vm395 = vcmp.lt.f32.partialorder %v381, 0.11
        %v396 = vsel %vm395, %v391, %v394
        %v397 = vadd.f32 %v379, %v396
        %v398 = vsub.f32 %v322, %v356
        %v399 = vand.u32 2147483647, %v398
        %v400 = vmul.f32 %v399, 19.085537
        %v401 = vadd.f32 %v400, 1.0
        %v402 = vmul.f32 %v401, 0.026197849
        %v403 = vmul.f32 %v400, %v367
        %v404 = vadd.f32 %v403, 1.0
        %v405 = vlog2.pop %v404
        %v406 = vmul.f32 %v405, 0.6931472
        %v407 = vmul.f32 %v402, %v406
        %v408 = vmul.f32 %v399, 0.5
        %v409 = vsub.f32 %v407, %v408
        %v410 = vmul.f32 %v399, 1.5
        %v411 = vadd.f32 %v410, 0.078593545
        %v412 = vsub.f32 %v411, 0.055
        %vm413 = vcmp.lt.f32.partialorder %v399, 0.11
        %v414 = vsel %vm413, %v409, %v412
        %v415 = vadd.f32 %v397, %v414
        %v416 = vsub.f32 %v323, %v361
        %v417 = vand.u32 2147483647, %v416
        %v418 = vmul.f32 %v417, 19.085537
        %v419 = vadd.f32 %v418, 1.0
        %v420 = vmul.f32 %v419, 0.026197849
        %v421 = vmul.f32 %v418, %v367
        %v422 = vadd.f32 %v421, 1.0
        %v423 = vlog2.pop %v422
        %v424 = vmul.f32 %v423, 0.6931472
        %v425 = vmul.f32 %v420, %v424
        %v426 = vmul.f32 %v417, 0.5
        %v427 = vsub.f32 %v425, %v426
        %v428 = vmul.f32 %v417, 1.5
        %v429 = vadd.f32 %v428, 0.078593545
        %v430 = vsub.f32 %v429, 0.055
        %vm431 = vcmp.lt.f32.partialorder %v417, 0.11
        %v432 = vsel %vm431, %v427, %v430
        %v433 = vadd.f32 %v415, %v432
        %v434 = vmul.f32 %v433, %v332
        %435 = vadd.xlane.f32.xlu0 %v434
        %v436 = vpop.xlane.xlu0 %435
        %v437 = vrot.slane %v436, 4
        %v438 = vadd.f32 %v436, %v437
        %v439 = vrot.slane %v438, 2
        %v440 = vadd.f32 %v438, %v439
        %v441 = vrot.slane %v440, 1
        %v442 = vadd.f32 %v440, %v441
        %s443 = vtos %v442
        %v444 = vmul.f32 %v320, 0.1
        %v445 = vmul.f32 %v444, %v333
        %v446 = vadd.f32 %v328, %v445
        %v447 = vmul.f32 %v321, 0.1
        %v448 = vmul.f32 %v447, %v334
        %v449 = vadd.f32 %v329, %v448
        %v450 = vmul.f32 %v322, 0.2
        %v451 = vmul.f32 %v450, 1.442695
        %v452 = vpow.pop %v451
        %v453 = vmul.f32 %v333, %v452
        %v454 = vmul.f32 %v323, 0.2
        %v455 = vmul.f32 %v454, 1.442695
        %v456 = vpow.pop %v455
        %v457 = vmul.f32 %v334, %v456
        %v458 = vmul.f32 %v453, 0.5
        %v459 = vsub.f32 %v446, %v458
        %v460 = vmul.f32 %v457, 0.5
        %v461 = vsub.f32 %v449, %v460
        %v462 = vadd.f32 %v459, %v453
        %v463 = vadd.f32 %v461, %v457
        %v464 = vmin.f32 %v462, %v326
        %v465 = vmax.f32 %v459, %v324
        %v466 = vsub.f32 %v464, %v465
        %v467 = vmax.f32 %v466, 0.0
        %v468 = vmin.f32 %v463, %v327
        %v469 = vmax.f32 %v461, %v325
        %v470 = vsub.f32 %v468, %v469
        %v471 = vmax.f32 %v470, 0.0
        %v472 = vmul.f32 %v467, %v471
        %v473 = vmul.f32 %v453, %v457
        %v474 = vmul.f32 %v335, %v337
        %v475 = vadd.f32 %v473, %v474
        %v476 = vsub.f32 %v475, %v472
        %v477 = vadd.f32 %v476, 1e-07
        %v478 = vrcp.pop %v477
        %v479 = vmul.f32 %v472, %v478
        %v480 = vsub.f32 %v340, %v446
        %v481 = vsub.f32 %v346, %v449
        %v482 = vmul.f32 %v480, %v480
        %v483 = vmul.f32 %v481, %v481
        %v484 = vadd.f32 %v482, %v483
        %v485 = vrsqrt.pop %v484
        %v486 = vmul.f32 %v484, %v485
        %vm487 = vcmp.eq.f32.partialorder %v484, inf
        %v488 = vsel %vm487, %v484, %v486
        %vm489 = vcmp.eq.f32.partialorder %v484, 0.0
        %v490 = vand.u32 %v484, 2147483648
        %v491 = vsel %vm489, %v490, %v488
        %v492 = vadd.f32 %v491, 1e-07
        %v493 = vrcp.pop %v492
        %v494 = vand.u32 2147483647, %v481
        %v495 = vmul.f32 %v494, %v493
        %v496 = vand.u32 2147483647, %v480
        %v497 = vmul.f32 %v496, %v493
        %vm498 = vcmp.gt.f32.partialorder %v495, 0.70710677
        %v499 = vsel %vm498, %v497, %v495
        %v500 = vmul.f32 %v499, 2.0
        %v501 = vmul.f32 %v499, %v499
        %v502 = vsub.f32 1.0, %v501
        %v503 = vmax.f32 %v502, 0.0
        %v504 = vrsqrt.pop %v503
        %v505 = vmul.f32 %v503, %v504
        %vm506 = vcmp.eq.f32.partialorder %v503, inf
        %v507 = vsel %vm506, %v503, %v505
        %vm508 = vcmp.eq.f32.partialorder %v503, 0.0
        %v509 = vand.u32 %v503, 2147483648
        %v510 = vsel %vm508, %v509, %v507
        %v511 = vmul.f32 %v500, %v510
        %v512 = vmax.f32 %v462, %v326
        %v513 = vmin.f32 %v459, %v324
        %v514 = vsub.f32 %v512, %v513
        %v515 = vadd.f32 %v514, 1e-07
        %v516 = vmax.f32 %v463, %v327
        %v517 = vmin.f32 %v461, %v325
        %v518 = vsub.f32 %v516, %v517
        %v519 = vadd.f32 %v518, 1e-07
        %v520 = vrcp.pop %v515
        %v521 = vmul.f32 %v480, %v520
        %v522 = vrcp.pop %v519
        %v523 = vmul.f32 %v481, %v522
        %v524 = vsub.f32 2.0, %v511
        %v525 = vsub.f32 0.0, %v524
        %v526 = vmul.f32 %v525, %v521
        %v527 = vmul.f32 %v526, %v521
        %v528 = vmul.f32 %v527, 1.442695
        %v529 = vpow.pop %v528
        %v530 = vsub.f32 2.0, %v529
        %v531 = vmul.f32 %v525, %v523
        %v532 = vmul.f32 %v531, %v523
        %v533 = vmul.f32 %v532, 1.442695
        %v534 = vpow.pop %v533
        %v535 = vsub.f32 %v530, %v534
        %v536 = vsub.f32 %v453, %v335
        %v537 = vand.u32 2147483647, %v536
        %v538 = vmax.f32 %v453, %v335
        %v539 = vadd.f32 %v538, 1e-07
        %v540 = vrcp.pop %v539
        %v541 = vmul.f32 %v537, %v540
        %v542 = vsub.f32 %v457, %v337
        %v543 = vand.u32 2147483647, %v542
        %v544 = vmax.f32 %v457, %v337
        %v545 = vadd.f32 %v544, 1e-07
        %v546 = vrcp.pop %v545
        %v547 = vmul.f32 %v543, %v546
        %v548 = vsub.f32 0.0, %v541
        %v549 = vmul.f32 %v548, 1.442695
        %v550 = vpow.pop %v549
        %v551 = vsub.f32 1.0, %v550
        %v552 = vsub.f32 0.0, %v547
        %v553 = vmul.f32 %v552, 1.442695
        %v554 = vpow.pop %v553
        %v555 = vsub.f32 1.0, %v554
        %v556 = vmul.f32 %v551, %v551
        %v557 = vmul.f32 %v555, %v555
        %v558 = vmul.f32 %v556, %v556
        %v559 = vmul.f32 %v557, %v557
        %v560 = vadd.f32 %v558, %v559
        %v561 = vadd.f32 %v535, %v560
        %v562 = vmul.f32 %v561, 0.5
        %v563 = vsub.f32 %v479, %v562
        %v564 = vsub.f32 1.0, %v563
        %v565 = vmul.f32 %v332, 4.0
        %v566 = vmul.f32 %v564, %v565
        %567 = vadd.xlane.f32.xlu0 %v566
        %v568 = vpop.xlane.xlu0 %567
        %v569 = vrot.slane %v568, 4
        %v570 = vadd.f32 %v568, %v569
        %v571 = vrot.slane %v570, 2
        %v572 = vadd.f32 %v570, %v571
        %v573 = vrot.slane %v572, 1
        %v574 = vadd.f32 %v572, %v573
        %s575 = vtos %v574
        %s576 = sld [smem:[#allocation2]]
        %s577 = sadd.f32 %s443, %s575
        %s578 = sadd.f32 %s576, %s577
        %s579 = scalar_lea.smem [#allocation2], 0
        %580 = sst [smem:[%s579]] %s578
      $region44: #{multibox_loss.4} parent=35 // pred_fallthru
        _
      // Predicated region
      $region45: #{multibox_loss.4} parent=35 // pred_check
        %p581 = pneg %p302
      $region46: #{multibox_loss.4} parent=35 // pred_check_branch
        %583 = sbr.rel (%p581) target = $region48
      $region47: #{multibox_loss.4} parent=35 // pred_region
        %v584 = vlaneseq
        %v585 = vshrl.u32 %v584, 7
        %v586 = vlaneseq
        %v587 = vand.u32 %v586, 127
        %vm588 = vcmp.eq.s32.totalorder %v585, 0
        %vm589 = vcmp.eq.s32.totalorder %v587, 0
        %vm590 = vmand %vm588, %vm589
        %s591 = sld [smem:[#allocation2]]
        %v592 = vstv %s591
        %v593 = vsel %vm590, %v592, 0.0
        %594 = vst [vmem:[%s301] sm:$0xff] %v593
      $region48: #{multibox_loss.4} parent=35 // pred_fallthru
        _
      %p595 = scmp.lt.s32.totalorder %s26, 1
      %s596 = scalar_select %p595, %s26, 1
      %s597 = smul.addr %s596, 8
      %s598 = scalar_lea.vmem %s5, %s597
      // Predicated region
      $region49: #{multibox_loss.4} parent=35 // pred_check
        %p599 = pneg %p162
      $region50: #{multibox_loss.4} parent=35 // pred_check_branch
        %601 = sbr.rel (%p599) target = $region52
      $region51: #{multibox_loss.4} parent=35 // pred_region
        _
      $region52: #{multibox_loss.4} parent=35 // pred_fallthru
        _
    $region36: #{multibox_loss.4} parent=5 // pred_fallthru
      _
    %p602 = scmp.le.s32.totalorder 2, %s17
    // Predicated region
    $region53: #{multibox_loss.4} parent=5 // pred_check
      %p603 = pneg %p602
    $region54: #{multibox_loss.4} parent=5 // pred_check_branch
      %605 = sbr.rel (%p603) target = $region56
    $region55: #{multibox_loss.4} parent=5 // pred_region
      %s606 = ssub.s32 %s17, 2
      // Predicated region
      $region57: #{multibox_loss.4} parent=55 // pred_check
        %p607 = pneg %p168
      $region58: #{multibox_loss.4} parent=55 // pred_check_branch
        %609 = sbr.rel (%p607) target = $region60
      $region59: #{multibox_loss.4} parent=55 // pred_region
        %p610 = scmp.lt.s32.totalorder %s28, 1
        %s611 = scalar_select %p610, %s28, 1
        %s612 = smul.addr %s611, 8
        %s613 = scalar_lea.vmem %s5, %s612
      $region60: #{multibox_loss.4} parent=55 // pred_fallthru
        _
    $region56: #{multibox_loss.4} parent=5 // pred_fallthru
      _
  $region6: #{multibox_loss.4} parent=0 // loop_footer
    %s21 = sadd.s32 1, %s17
  $region7: #{multibox_loss.4} parent=0 // loop_footer_branch
    %16 = sbr.rel target = $region3
  $region8: #{multibox_loss.4} parent=0 // loop_exit
    _

</llo_original>
